<compile_context>
chip_gen: v5e
topology: v5e:2x2
jax: 0.10.0
libtpu: 0.0.40
codegen_flags: <defaults>
</compile_context>

<pallas_src>
import math
from functools import partial

import jax
import jax.numpy as jnp
from jax import lax
from jax.experimental import pallas as pl
from jax.experimental.pallas import tpu as pltpu

# Hyperparameters from the PyTorch module
VOCAB_SIZE = 20
EMBED_DIM = 16
NUM_HEADS = 2
HEAD_DIM = EMBED_DIM // NUM_HEADS
NUM_LAYERS = 2
HIDDEN_DIM = 32
LN_EPS = 1e-5
OUT_PAD = 128          # lane-dense padded logits width (sliced back to VOCAB_SIZE)


def _layernorm(x, gamma, beta):
    mu = jnp.mean(x, axis=-1, keepdims=True)
    xc = x - mu
    var = jnp.mean(xc * xc, axis=-1, keepdims=True)
    inv = lax.rsqrt(var + LN_EPS)
    return xc * inv * gamma + beta


def transformer_kernel(tok_ref, emb_ref, qkvw_ref, opw_ref, w1_ref, b1_ref,
                       w2_ref, vecs_ref, fcw_ref, fcb_ref,
                       out_ref, ctx_ref, *, seq, tb):
    S, E, H, D = seq, EMBED_DIM, NUM_HEADS, HEAD_DIM
    M = tb * S                                                   # stacked rows

    # ---- embedding lookup as one-hot @ table (MXU, bf16 operands) ----
    tok = tok_ref[0]                                             # (M, 1) int32
    vocab_iota = lax.broadcasted_iota(jnp.int32, (M, VOCAB_SIZE), 1)
    onehot = (tok == vocab_iota).astype(jnp.bfloat16)            # (M, V)
    x = jnp.dot(onehot, emb_ref[...],
                preferred_element_type=jnp.float32)              # (M, E) f32

    # ---- block-diagonal additive mask (hoisted, reused by all layers/heads) ----
    if tb > 1:
        row_seq = lax.broadcasted_iota(jnp.int32, (M, M), 0) // S
        col_seq = lax.broadcasted_iota(jnp.int32, (M, M), 1) // S
        neg_mask = jnp.where(row_seq == col_seq, 0.0, -1e30).astype(jnp.float32)
    else:
        neg_mask = None

    scale = 1.0 / math.sqrt(D)

    for l in range(NUM_LAYERS):                                  # static unroll
        w_qkv = qkvw_ref[l]                                      # (3, E, E) bf16
        vec = vecs_ref[l]                                        # (9, E) f32
        bq, bk, bv = vec[0:1], vec[1:2], vec[2:3]
        opb, ln1w, ln1b = vec[3:4], vec[4:5], vec[5:6]
        b2, ln2w, ln2b = vec[6:7], vec[7:8], vec[8:9]

        # ---- Q/K/V projections: three clean (M,E)@(E,E) matmuls ----
        xb = x.astype(jnp.bfloat16)
        q = (jnp.dot(xb, w_qkv[0], preferred_element_type=jnp.float32) + bq) * scale
        k = jnp.dot(xb, w_qkv[1], preferred_element_type=jnp.float32) + bk
        v = jnp.dot(xb, w_qkv[2], preferred_element_type=jnp.float32) + bv

        # ---- multi-head self-attention on the stacked (M, ...) operand:
        #      per head ONE (M,M) score matmul + block-diag mask; per-head
        #      context written into its lane range of a VMEM scratch so the
        #      output projection is a single (M,E)@(E,E) matmul ----
        for h in range(H):
            hs = slice(h * D, (h + 1) * D)
            qh = q[:, hs].astype(jnp.bfloat16)                   # (M, D)
            kh = k[:, hs].astype(jnp.bfloat16)
            vh = v[:, hs].astype(jnp.bfloat16)
            scores = lax.dot_general(                            # (M, M) = qh @ kh.T
                qh, kh, (((1,), (1,)), ((), ())),
                preferred_element_type=jnp.float32)
            if neg_mask is not None:
                scores = scores + neg_mask
            scores = scores - jnp.max(scores, axis=-1, keepdims=True)
            p = jnp.exp(scores)
            p = p * pl.reciprocal(jnp.sum(p, axis=-1, keepdims=True), approx=True)
            ctx_ref[:, hs] = jnp.dot(p.astype(jnp.bfloat16), vh,
                                     preferred_element_type=jnp.float32)

        attn = jnp.dot(ctx_ref[...].astype(jnp.bfloat16), opw_ref[l],
                       preferred_element_type=jnp.float32) + opb
        x = _layernorm(x + attn, ln1w, ln1b)

        # ---- feed-forward (ReLU), bf16 operands, f32 accumulation ----
        xb = x.astype(jnp.bfloat16)
        ff = jnp.maximum(
            jnp.dot(xb, w1_ref[l], preferred_element_type=jnp.float32)
            + b1_ref[l:l + 1], 0.0)                              # (M, FF)
        ff = jnp.dot(ff.astype(jnp.bfloat16), w2_ref[l],
                     preferred_element_type=jnp.float32) + b2
        x = _layernorm(x + ff, ln2w, ln2b)

    # ---- last token of every sequence in the block, then final fc ----
    if tb == 1:
        last = x[M - 1:M, :].astype(jnp.bfloat16)                # (1, E)
    else:
        r = lax.broadcasted_iota(jnp.int32, (tb, M), 0)
        c = lax.broadcasted_iota(jnp.int32, (tb, M), 1)
        sel = (c == r * S + (S - 1)).astype(jnp.bfloat16)        # (tb, M) one-hot
        last = jnp.dot(sel, x.astype(jnp.bfloat16),
                       preferred_element_type=jnp.float32).astype(jnp.bfloat16)

    logits = jnp.dot(last, fcw_ref[...],
                     preferred_element_type=jnp.float32) + fcb_ref[...]   # (tb, 128)
    out_ref[...] = logits.reshape(1, tb, OUT_PAD)


def prepare_params(params):
    """Host-side: transpose torch-layout weights to (in,out), split/pack, cast bf16."""
    L, E, V = NUM_LAYERS, EMBED_DIM, VOCAB_SIZE

    ipw_t = jnp.transpose(params["ipw"], (0, 2, 1))              # (L, E, 3E)
    qkvw = jnp.stack([ipw_t[:, :, 0:E], ipw_t[:, :, E:2 * E], ipw_t[:, :, 2 * E:3 * E]],
                     axis=1).astype(jnp.bfloat16)                # (L, 3, E, E)

    ipb3 = params["ipb"].reshape(L, 3, E)                        # bq, bk, bv
    vecs = jnp.concatenate([                                     # (L, 9, E) f32
        ipb3,
        params["opb"][:, None, :],
        params["ln1w"][:, None, :],
        params["ln1b"][:, None, :],
        params["b2"][:, None, :],
        params["ln2w"][:, None, :],
        params["ln2b"][:, None, :]], axis=1).astype(jnp.float32)

    fcw_t = jnp.transpose(params["fcw"], (1, 0))                 # (E, V)
    fcw_pad = jnp.zeros((E, OUT_PAD), jnp.float32).at[:, :V].set(fcw_t)
    fcb_pad = jnp.zeros((1, OUT_PAD), jnp.float32).at[:, :V].set(params["fcb"])

    return {
        "emb":  params["emb"].astype(jnp.bfloat16),                          # (V, E)
        "qkvw": qkvw,                                                        # (L,3,E,E)
        "opw":  jnp.transpose(params["opw"], (0, 2, 1)).astype(jnp.bfloat16),  # (L,E,E)
        "w1":   jnp.transpose(params["w1"], (0, 2, 1)).astype(jnp.bfloat16),   # (L,E,FF)
        "b1":   params["b1"].astype(jnp.float32),                            # (L, FF)
        "w2":   jnp.transpose(params["w2"], (0, 2, 1)).astype(jnp.bfloat16),   # (L,FF,E)
        "vecs": vecs,                                                        # (L, 9, E)
        "fcw":  fcw_pad.astype(jnp.bfloat16),                                # (E, 128)
        "fcb":  fcb_pad,                                                     # (1, 128)
    }


def simple_transformer_forward(tokens, prepared, *, target_rows=128):
    B, S = tokens.shape

    # Block TB sequences per grid step so TB*S targets the 128-row MXU tile,
    # but keep at least two grid steps (v7x: one per TensorCore) when B >= 2.
    TB = max(1, min(B, target_rows // S)) if S <= target_rows else 1
    if B >= 2 and pl.cdiv(B, TB) < 2:
        TB = pl.cdiv(B, 2)
    G = pl.cdiv(B, TB)
    B_pad = G * TB
    M = TB * S

    if B_pad > B:  # pad batch with token-id 0; padded rows are discarded later
        tokens = jnp.concatenate(
            [tokens, jnp.zeros((B_pad - B, S), tokens.dtype)], axis=0)
    tok = tokens.reshape(G, M, 1).astype(jnp.int32)

    weight_args = (prepared["emb"], prepared["qkvw"], prepared["opw"],
                   prepared["w1"], prepared["b1"], prepared["w2"],
                   prepared["vecs"], prepared["fcw"], prepared["fcb"])

    def rep_spec(a):  # full-array block, resident across all grid steps
        nd = a.ndim
        return pl.BlockSpec(a.shape, lambda i, _nd=nd: (0,) * _nd)

    in_specs = ([pl.BlockSpec((1, M, 1), lambda i: (i, 0, 0))]   # TB sequences per step
                + [rep_spec(a) for a in weight_args])
    out_specs = pl.BlockSpec((1, TB, OUT_PAD), lambda i: (i, 0, 0))

    kernel = partial(transformer_kernel, seq=S, tb=TB)
    out = pl.pallas_call(
        kernel,
        grid=(G,),
        in_specs=in_specs,
        out_specs=out_specs,
        out_shape=jax.ShapeDtypeStruct((G, TB, OUT_PAD), jnp.float32),
        scratch_shapes=[pltpu.VMEM((M, EMBED_DIM), jnp.float32)],  # per-head ctx lanes
        compiler_params=pltpu.CompilerParams(
            dimension_semantics=("parallel",)),                  # v7x: split grid over 2 TCs
    )(tok, *weight_args)
    return out.reshape(B_pad, OUT_PAD)[:B, :VOCAB_SIZE]


def init_params(key):
    ks = jax.random.split(key, 11)

    def rnd(k, shape, scale=0.1):
        return jax.random.normal(k, shape, dtype=jnp.float32) * scale

    return {
        "emb":  rnd(ks[0], (VOCAB_SIZE, EMBED_DIM)),
        "ipw":  rnd(ks[1], (NUM_LAYERS, 3 * EMBED_DIM, EMBED_DIM)),
        "ipb":  rnd(ks[2], (NUM_LAYERS, 3 * EMBED_DIM)),
        "opw":  rnd(ks[3], (NUM_LAYERS, EMBED_DIM, EMBED_DIM)),
        "opb":  rnd(ks[4], (NUM_LAYERS, EMBED_DIM)),
        "ln1w": jnp.ones((NUM_LAYERS, EMBED_DIM), jnp.float32),
        "ln1b": jnp.zeros((NUM_LAYERS, EMBED_DIM), jnp.float32),
        "ln2w": jnp.ones((NUM_LAYERS, EMBED_DIM), jnp.float32),
        "ln2b": jnp.zeros((NUM_LAYERS, EMBED_DIM), jnp.float32),
        "w1":   rnd(ks[5], (NUM_LAYERS, HIDDEN_DIM, EMBED_DIM)),
        "b1":   rnd(ks[6], (NUM_LAYERS, HIDDEN_DIM)),
        "w2":   rnd(ks[7], (NUM_LAYERS, EMBED_DIM, HIDDEN_DIM)),
        "b2":   rnd(ks[8], (NUM_LAYERS, EMBED_DIM)),
        "fcw":  rnd(ks[9], (VOCAB_SIZE, EMBED_DIM)),
        "fcb":  rnd(ks[10], (1, VOCAB_SIZE)),
    }


if __name__ == "__main__":
    key = jax.random.PRNGKey(0)
    k_tok, k_par = jax.random.split(key)

    batch, seq = 2, 8
    tokens = jax.random.randint(k_tok, (batch, seq), 0, VOCAB_SIZE, dtype=jnp.int32)
    params = init_params(k_par)
    prepared = prepare_params(params)           # host-side transposes / packing / bf16 cast

    out = simple_transformer_forward(tokens, prepared)
    out = jax.block_until_ready(out)
    assert out.shape == (batch, VOCAB_SIZE) and out.dtype == jnp.float32
    print("KERNEL_OK")
</pallas_src>

<mosaic_0001>
module attributes {stable_mosaic.version = 11 : i64} {
  func.func @transformer_kernel(%arg0: i32, %arg1: memref<1x8x1xi32, #tpu.memory_space<vmem>>, %arg2: memref<20x16xbf16, #tpu.memory_space<vmem>>, %arg3: memref<2x3x16x16xbf16, #tpu.memory_space<vmem>>, %arg4: memref<2x16x16xbf16, #tpu.memory_space<vmem>>, %arg5: memref<2x16x32xbf16, #tpu.memory_space<vmem>>, %arg6: memref<2x32xf32, #tpu.memory_space<vmem>>, %arg7: memref<2x32x16xbf16, #tpu.memory_space<vmem>>, %arg8: memref<2x9x16xf32, #tpu.memory_space<vmem>>, %arg9: memref<16x128xbf16, #tpu.memory_space<vmem>>, %arg10: memref<1x128xf32, #tpu.memory_space<vmem>>, %arg11: memref<1x1x128xf32, #tpu.memory_space<vmem>>, %arg12: memref<8x16xf32, #tpu.memory_space<vmem>>) attributes {dimension_semantics = [#tpu.dimension_semantics<parallel>], iteration_bounds = array<i64: 2>, scalar_prefetch = 0 : i64, scratch_operands = 1 : i64, tpu.core_type = #tpu.core_type<tc>, window_params = [{transform_indices = @transform_0, window_bounds = array<i64: 1, 8, 1>}, {pipeline_mode = #tpu.pipeline_mode<synchronous>, transform_indices = @transform_1, window_bounds = array<i64: 20, 16>}, {pipeline_mode = #tpu.pipeline_mode<synchronous>, transform_indices = @transform_2, window_bounds = array<i64: 2, 3, 16, 16>}, {pipeline_mode = #tpu.pipeline_mode<synchronous>, transform_indices = @transform_3, window_bounds = array<i64: 2, 16, 16>}, {pipeline_mode = #tpu.pipeline_mode<synchronous>, transform_indices = @transform_4, window_bounds = array<i64: 2, 16, 32>}, {pipeline_mode = #tpu.pipeline_mode<synchronous>, transform_indices = @transform_5, window_bounds = array<i64: 2, 32>}, {pipeline_mode = #tpu.pipeline_mode<synchronous>, transform_indices = @transform_6, window_bounds = array<i64: 2, 32, 16>}, {pipeline_mode = #tpu.pipeline_mode<synchronous>, transform_indices = @transform_7, window_bounds = array<i64: 2, 9, 16>}, {pipeline_mode = #tpu.pipeline_mode<synchronous>, transform_indices = @transform_8, window_bounds = array<i64: 16, 128>}, {pipeline_mode = #tpu.pipeline_mode<synchronous>, transform_indices = @transform_9, window_bounds = array<i64: 1, 128>}, {transform_indices = @transform_10, window_bounds = array<i64: 1, 1, 128>}]} {
    %c0 = arith.constant 0 : index
    %c0_0 = arith.constant 0 : index
    %c0_1 = arith.constant 0 : index
    %0 = vector.load %arg1[%c0, %c0_0, %c0_1] : memref<1x8x1xi32, #tpu.memory_space<vmem>>, vector<1x8x1xi32>
    %1 = vector.shape_cast %0 : vector<1x8x1xi32> to vector<8x1xi32>
    %2 = tpu.iota {dimensions = array<i32: 1>} : vector<8x20xi32>
    %3 = vector.broadcast %1 : vector<8x1xi32> to vector<8x20xi32>
    %4 = arith.cmpi eq, %3, %2 : vector<8x20xi32>
    %5 = arith.extui %4 : vector<8x20xi1> to vector<8x20xi32>
    %6 = arith.sitofp %5 : vector<8x20xi32> to vector<8x20xf32>
    %7 = arith.truncf %6 : vector<8x20xf32> to vector<8x20xbf16>
    %c0_2 = arith.constant 0 : index
    %c0_3 = arith.constant 0 : index
    %8 = vector.load %arg2[%c0_2, %c0_3] : memref<20x16xbf16, #tpu.memory_space<vmem>>, vector<20x16xbf16>
    %cst = arith.constant dense<0.000000e+00> : vector<8x16xf32>
    %9 = tpu.matmul %7, %8, %cst {dimension_numbers = #tpu.dot_dimension_numbers<[1], [0], [0], [1], [0, 0, 1, 1], [], []>} : vector<8x20xbf16>, vector<20x16xbf16>, vector<8x16xf32> -> vector<8x16xf32>
    %c0_4 = arith.constant 0 : index
    %c0_5 = arith.constant 0 : index
    %c0_6 = arith.constant 0 : index
    %c0_7 = arith.constant 0 : index
    %10 = vector.load %arg3[%c0_4, %c0_5, %c0_6, %c0_7] : memref<2x3x16x16xbf16, #tpu.memory_space<vmem>>, vector<1x3x16x16xbf16>
    %11 = vector.shape_cast %10 : vector<1x3x16x16xbf16> to vector<3x16x16xbf16>
    %c0_8 = arith.constant 0 : index
    %c0_9 = arith.constant 0 : index
    %c0_10 = arith.constant 0 : index
    %12 = vector.load %arg8[%c0_8, %c0_9, %c0_10] : memref<2x9x16xf32, #tpu.memory_space<vmem>>, vector<1x9x16xf32>
    %13 = vector.shape_cast %12 : vector<1x9x16xf32> to vector<9x16xf32>
    %14 = vector.extract_strided_slice %13 {offsets = [0, 0], sizes = [1, 16], strides = [1, 1]} : vector<9x16xf32> to vector<1x16xf32>
    %15 = vector.extract_strided_slice %13 {offsets = [1, 0], sizes = [1, 16], strides = [1, 1]} : vector<9x16xf32> to vector<1x16xf32>
    %16 = vector.extract_strided_slice %13 {offsets = [2, 0], sizes = [1, 16], strides = [1, 1]} : vector<9x16xf32> to vector<1x16xf32>
    %17 = vector.extract_strided_slice %13 {offsets = [3, 0], sizes = [1, 16], strides = [1, 1]} : vector<9x16xf32> to vector<1x16xf32>
    %18 = vector.extract_strided_slice %13 {offsets = [4, 0], sizes = [1, 16], strides = [1, 1]} : vector<9x16xf32> to vector<1x16xf32>
    %19 = vector.extract_strided_slice %13 {offsets = [5, 0], sizes = [1, 16], strides = [1, 1]} : vector<9x16xf32> to vector<1x16xf32>
    %20 = vector.extract_strided_slice %13 {offsets = [6, 0], sizes = [1, 16], strides = [1, 1]} : vector<9x16xf32> to vector<1x16xf32>
    %21 = vector.extract_strided_slice %13 {offsets = [7, 0], sizes = [1, 16], strides = [1, 1]} : vector<9x16xf32> to vector<1x16xf32>
    %22 = vector.extract_strided_slice %13 {offsets = [8, 0], sizes = [1, 16], strides = [1, 1]} : vector<9x16xf32> to vector<1x16xf32>
    %23 = arith.truncf %9 : vector<8x16xf32> to vector<8x16xbf16>
    %24 = vector.extract_strided_slice %11 {offsets = [0, 0, 0], sizes = [1, 16, 16], strides = [1, 1, 1]} : vector<3x16x16xbf16> to vector<1x16x16xbf16>
    %25 = vector.shape_cast %24 : vector<1x16x16xbf16> to vector<16x16xbf16>
    %cst_11 = arith.constant dense<0.000000e+00> : vector<8x16xf32>
    %26 = tpu.matmul %23, %25, %cst_11 {dimension_numbers = #tpu.dot_dimension_numbers<[1], [0], [0], [1], [0, 0, 1, 1], [], []>} : vector<8x16xbf16>, vector<16x16xbf16>, vector<8x16xf32> -> vector<8x16xf32>
    %27 = vector.broadcast %14 : vector<1x16xf32> to vector<8x16xf32>
    %28 = arith.addf %26, %27 : vector<8x16xf32>
    %cst_12 = arith.constant 0.353553385 : f32
    %29 = vector.broadcast %cst_12 : f32 to vector<8x16xf32>
    %30 = arith.mulf %28, %29 : vector<8x16xf32>
    %31 = vector.extract_strided_slice %11 {offsets = [1, 0, 0], sizes = [1, 16, 16], strides = [1, 1, 1]} : vector<3x16x16xbf16> to vector<1x16x16xbf16>
    %32 = vector.shape_cast %31 : vector<1x16x16xbf16> to vector<16x16xbf16>
    %cst_13 = arith.constant dense<0.000000e+00> : vector<8x16xf32>
    %33 = tpu.matmul %23, %32, %cst_13 {dimension_numbers = #tpu.dot_dimension_numbers<[1], [0], [0], [1], [0, 0, 1, 1], [], []>} : vector<8x16xbf16>, vector<16x16xbf16>, vector<8x16xf32> -> vector<8x16xf32>
    %34 = vector.broadcast %15 : vector<1x16xf32> to vector<8x16xf32>
    %35 = arith.addf %33, %34 : vector<8x16xf32>
    %36 = vector.extract_strided_slice %11 {offsets = [2, 0, 0], sizes = [1, 16, 16], strides = [1, 1, 1]} : vector<3x16x16xbf16> to vector<1x16x16xbf16>
    %37 = vector.shape_cast %36 : vector<1x16x16xbf16> to vector<16x16xbf16>
    %cst_14 = arith.constant dense<0.000000e+00> : vector<8x16xf32>
    %38 = tpu.matmul %23, %37, %cst_14 {dimension_numbers = #tpu.dot_dimension_numbers<[1], [0], [0], [1], [0, 0, 1, 1], [], []>} : vector<8x16xbf16>, vector<16x16xbf16>, vector<8x16xf32> -> vector<8x16xf32>
    %39 = vector.broadcast %16 : vector<1x16xf32> to vector<8x16xf32>
    %40 = arith.addf %38, %39 : vector<8x16xf32>
    %41 = vector.extract_strided_slice %30 {offsets = [0, 0], sizes = [8, 8], strides = [1, 1]} : vector<8x16xf32> to vector<8x8xf32>
    %42 = arith.truncf %41 : vector<8x8xf32> to vector<8x8xbf16>
    %43 = vector.extract_strided_slice %35 {offsets = [0, 0], sizes = [8, 8], strides = [1, 1]} : vector<8x16xf32> to vector<8x8xf32>
    %44 = arith.truncf %43 : vector<8x8xf32> to vector<8x8xbf16>
    %45 = vector.extract_strided_slice %40 {offsets = [0, 0], sizes = [8, 8], strides = [1, 1]} : vector<8x16xf32> to vector<8x8xf32>
    %46 = arith.truncf %45 : vector<8x8xf32> to vector<8x8xbf16>
    %cst_15 = arith.constant dense<0.000000e+00> : vector<8x8xf32>
    %47 = tpu.matmul %42, %44, %cst_15 {dimension_numbers = #tpu.dot_dimension_numbers<[1], [1], [0], [0], [0, 0, 1, 0], [], []>} : vector<8x8xbf16>, vector<8x8xbf16>, vector<8x8xf32> -> vector<8x8xf32>
    %cst_16 = arith.constant dense<0xFF800000> : vector<8xf32>
    %48 = vector.multi_reduction <maximumf>, %47, %cst_16 [1] : vector<8x8xf32> to vector<8xf32>
    %49 = vector.shape_cast %48 : vector<8xf32> to vector<8x1xf32>
    %50 = vector.broadcast %49 : vector<8x1xf32> to vector<8x8xf32>
    %51 = arith.subf %47, %50 : vector<8x8xf32>
    %52 = math.exp %51 : vector<8x8xf32>
    %cst_17 = arith.constant dense<0.000000e+00> : vector<8xf32>
    %53 = vector.multi_reduction <add>, %52, %cst_17 [1] : vector<8x8xf32> to vector<8xf32>
    %54 = vector.shape_cast %53 : vector<8xf32> to vector<8x1xf32>
    %55 = tpu.reciprocal %54 {approx = true} : vector<8x1xf32> -> vector<8x1xf32>
    %56 = vector.broadcast %55 : vector<8x1xf32> to vector<8x8xf32>
    %57 = arith.mulf %52, %56 : vector<8x8xf32>
    %58 = arith.truncf %57 : vector<8x8xf32> to vector<8x8xbf16>
    %cst_18 = arith.constant dense<0.000000e+00> : vector<8x8xf32>
    %59 = tpu.matmul %58, %46, %cst_18 {dimension_numbers = #tpu.dot_dimension_numbers<[1], [0], [0], [1], [0, 0, 1, 1], [], []>} : vector<8x8xbf16>, vector<8x8xbf16>, vector<8x8xf32> -> vector<8x8xf32>
    %c0_19 = arith.constant 0 : index
    %c0_20 = arith.constant 0 : index
    %60 = vector.load %arg12[%c0_19, %c0_20] : memref<8x16xf32, #tpu.memory_space<vmem>>, vector<8x8xf32>
    tpu.vector_store %arg12[%c0_19, %c0_20], %59 {strides = array<i32>} : memref<8x16xf32, #tpu.memory_space<vmem>>, vector<8x8xf32>,
    %61 = vector.extract_strided_slice %30 {offsets = [0, 8], sizes = [8, 8], strides = [1, 1]} : vector<8x16xf32> to vector<8x8xf32>
    %62 = arith.truncf %61 : vector<8x8xf32> to vector<8x8xbf16>
    %63 = vector.extract_strided_slice %35 {offsets = [0, 8], sizes = [8, 8], strides = [1, 1]} : vector<8x16xf32> to vector<8x8xf32>
    %64 = arith.truncf %63 : vector<8x8xf32> to vector<8x8xbf16>
    %65 = vector.extract_strided_slice %40 {offsets = [0, 8], sizes = [8, 8], strides = [1, 1]} : vector<8x16xf32> to vector<8x8xf32>
    %66 = arith.truncf %65 : vector<8x8xf32> to vector<8x8xbf16>
    %cst_21 = arith.constant dense<0.000000e+00> : vector<8x8xf32>
    %67 = tpu.matmul %62, %64, %cst_21 {dimension_numbers = #tpu.dot_dimension_numbers<[1], [1], [0], [0], [0, 0, 1, 0], [], []>} : vector<8x8xbf16>, vector<8x8xbf16>, vector<8x8xf32> -> vector<8x8xf32>
    %cst_22 = arith.constant dense<0xFF800000> : vector<8xf32>
    %68 = vector.multi_reduction <maximumf>, %67, %cst_22 [1] : vector<8x8xf32> to vector<8xf32>
    %69 = vector.shape_cast %68 : vector<8xf32> to vector<8x1xf32>
    %70 = vector.broadcast %69 : vector<8x1xf32> to vector<8x8xf32>
    %71 = arith.subf %67, %70 : vector<8x8xf32>
    %72 = math.exp %71 : vector<8x8xf32>
    %cst_23 = arith.constant dense<0.000000e+00> : vector<8xf32>
    %73 = vector.multi_reduction <add>, %72, %cst_23 [1] : vector<8x8xf32> to vector<8xf32>
    %74 = vector.shape_cast %73 : vector<8xf32> to vector<8x1xf32>
    %75 = tpu.reciprocal %74 {approx = true} : vector<8x1xf32> -> vector<8x1xf32>
    %76 = vector.broadcast %75 : vector<8x1xf32> to vector<8x8xf32>
    %77 = arith.mulf %72, %76 : vector<8x8xf32>
    %78 = arith.truncf %77 : vector<8x8xf32> to vector<8x8xbf16>
    %cst_24 = arith.constant dense<0.000000e+00> : vector<8x8xf32>
    %79 = tpu.matmul %78, %66, %cst_24 {dimension_numbers = #tpu.dot_dimension_numbers<[1], [0], [0], [1], [0, 0, 1, 1], [], []>} : vector<8x8xbf16>, vector<8x8xbf16>, vector<8x8xf32> -> vector<8x8xf32>
    %c0_25 = arith.constant 0 : index
    %c8 = arith.constant 8 : index
    %80 = vector.load %arg12[%c0_25, %c8] : memref<8x16xf32, #tpu.memory_space<vmem>>, vector<8x8xf32>
    tpu.vector_store %arg12[%c0_25, %c8], %79 {strides = array<i32>} : memref<8x16xf32, #tpu.memory_space<vmem>>, vector<8x8xf32>,
    %c0_26 = arith.constant 0 : index
    %c0_27 = arith.constant 0 : index
    %81 = vector.load %arg12[%c0_26, %c0_27] : memref<8x16xf32, #tpu.memory_space<vmem>>, vector<8x16xf32>
    %82 = arith.truncf %81 : vector<8x16xf32> to vector<8x16xbf16>
    %c0_28 = arith.constant 0 : index
    %c0_29 = arith.constant 0 : index
    %c0_30 = arith.constant 0 : index
    %83 = vector.load %arg4[%c0_28, %c0_29, %c0_30] : memref<2x16x16xbf16, #tpu.memory_space<vmem>>, vector<1x16x16xbf16>
    %84 = vector.shape_cast %83 : vector<1x16x16xbf16> to vector<16x16xbf16>
    %cst_31 = arith.constant dense<0.000000e+00> : vector<8x16xf32>
    %85 = tpu.matmul %82, %84, %cst_31 {dimension_numbers = #tpu.dot_dimension_numbers<[1], [0], [0], [1], [0, 0, 1, 1], [], []>} : vector<8x16xbf16>, vector<16x16xbf16>, vector<8x16xf32> -> vector<8x16xf32>
    %86 = vector.broadcast %17 : vector<1x16xf32> to vector<8x16xf32>
    %87 = arith.addf %85, %86 : vector<8x16xf32>
    %88 = arith.addf %9, %87 : vector<8x16xf32>
    %cst_32 = arith.constant dense<0.000000e+00> : vector<8xf32>
    %89 = vector.multi_reduction <add>, %88, %cst_32 [1] : vector<8x16xf32> to vector<8xf32>
    %90 = vector.shape_cast %89 : vector<8xf32> to vector<8x1xf32>
    %cst_33 = arith.constant 1.600000e+01 : f32
    %91 = vector.broadcast %cst_33 : f32 to vector<8x1xf32>
    %92 = arith.divf %90, %91 : vector<8x1xf32>
    %93 = vector.broadcast %92 : vector<8x1xf32> to vector<8x16xf32>
    %94 = arith.subf %88, %93 : vector<8x16xf32>
    %95 = arith.mulf %94, %94 : vector<8x16xf32>
    %cst_34 = arith.constant dense<0.000000e+00> : vector<8xf32>
    %96 = vector.multi_reduction <add>, %95, %cst_34 [1] : vector<8x16xf32> to vector<8xf32>
    %97 = vector.shape_cast %96 : vector<8xf32> to vector<8x1xf32>
    %cst_35 = arith.constant 1.600000e+01 : f32
    %98 = vector.broadcast %cst_35 : f32 to vector<8x1xf32>
    %99 = arith.divf %97, %98 : vector<8x1xf32>
    %cst_36 = arith.constant 9.99999974E-6 : f32
    %100 = vector.broadcast %cst_36 : f32 to vector<8x1xf32>
    %101 = arith.addf %99, %100 : vector<8x1xf32>
    %102 = math.rsqrt %101 : vector<8x1xf32>
    %103 = vector.broadcast %102 : vector<8x1xf32> to vector<8x16xf32>
    %104 = arith.mulf %94, %103 : vector<8x16xf32>
    %105 = vector.broadcast %18 : vector<1x16xf32> to vector<8x16xf32>
    %106 = arith.mulf %104, %105 : vector<8x16xf32>
    %107 = vector.broadcast %19 : vector<1x16xf32> to vector<8x16xf32>
    %108 = arith.addf %106, %107 : vector<8x16xf32>
    %109 = arith.truncf %108 : vector<8x16xf32> to vector<8x16xbf16>
    %c0_37 = arith.constant 0 : index
    %c0_38 = arith.constant 0 : index
    %c0_39 = arith.constant 0 : index
    %110 = vector.load %arg5[%c0_37, %c0_38, %c0_39] : memref<2x16x32xbf16, #tpu.memory_space<vmem>>, vector<1x16x32xbf16>
    %111 = vector.shape_cast %110 : vector<1x16x32xbf16> to vector<16x32xbf16>
    %cst_40 = arith.constant dense<0.000000e+00> : vector<8x32xf32>
    %112 = tpu.matmul %109, %111, %cst_40 {dimension_numbers = #tpu.dot_dimension_numbers<[1], [0], [0], [1], [0, 0, 1, 1], [], []>} : vector<8x16xbf16>, vector<16x32xbf16>, vector<8x32xf32> -> vector<8x32xf32>
    %c0_41 = arith.constant 0 : index
    %c0_42 = arith.constant 0 : index
    %113 = vector.load %arg6[%c0_41, %c0_42] : memref<2x32xf32, #tpu.memory_space<vmem>>, vector<1x32xf32>
    %114 = vector.broadcast %113 : vector<1x32xf32> to vector<8x32xf32>
    %115 = arith.addf %112, %114 : vector<8x32xf32>
    %cst_43 = arith.constant 0.000000e+00 : f32
    %116 = vector.broadcast %cst_43 : f32 to vector<8x32xf32>
    %117 = arith.maximumf %115, %116 : vector<8x32xf32>
    %118 = arith.truncf %117 : vector<8x32xf32> to vector<8x32xbf16>
    %c0_44 = arith.constant 0 : index
    %c0_45 = arith.constant 0 : index
    %c0_46 = arith.constant 0 : index
    %119 = vector.load %arg7[%c0_44, %c0_45, %c0_46] : memref<2x32x16xbf16, #tpu.memory_space<vmem>>, vector<1x32x16xbf16>
    %120 = vector.shape_cast %119 : vector<1x32x16xbf16> to vector<32x16xbf16>
    %cst_47 = arith.constant dense<0.000000e+00> : vector<8x16xf32>
    %121 = tpu.matmul %118, %120, %cst_47 {dimension_numbers = #tpu.dot_dimension_numbers<[1], [0], [0], [1], [0, 0, 1, 1], [], []>} : vector<8x32xbf16>, vector<32x16xbf16>, vector<8x16xf32> -> vector<8x16xf32>
    %122 = vector.broadcast %20 : vector<1x16xf32> to vector<8x16xf32>
    %123 = arith.addf %121, %122 : vector<8x16xf32>
    %124 = arith.addf %108, %123 : vector<8x16xf32>
    %cst_48 = arith.constant dense<0.000000e+00> : vector<8xf32>
    %125 = vector.multi_reduction <add>, %124, %cst_48 [1] : vector<8x16xf32> to vector<8xf32>
    %126 = vector.shape_cast %125 : vector<8xf32> to vector<8x1xf32>
    %cst_49 = arith.constant 1.600000e+01 : f32
    %127 = vector.broadcast %cst_49 : f32 to vector<8x1xf32>
    %128 = arith.divf %126, %127 : vector<8x1xf32>
    %129 = vector.broadcast %128 : vector<8x1xf32> to vector<8x16xf32>
    %130 = arith.subf %124, %129 : vector<8x16xf32>
    %131 = arith.mulf %130, %130 : vector<8x16xf32>
    %cst_50 = arith.constant dense<0.000000e+00> : vector<8xf32>
    %132 = vector.multi_reduction <add>, %131, %cst_50 [1] : vector<8x16xf32> to vector<8xf32>
    %133 = vector.shape_cast %132 : vector<8xf32> to vector<8x1xf32>
    %cst_51 = arith.constant 1.600000e+01 : f32
    %134 = vector.broadcast %cst_51 : f32 to vector<8x1xf32>
    %135 = arith.divf %133, %134 : vector<8x1xf32>
    %cst_52 = arith.constant 9.99999974E-6 : f32
    %136 = vector.broadcast %cst_52 : f32 to vector<8x1xf32>
    %137 = arith.addf %135, %136 : vector<8x1xf32>
    %138 = math.rsqrt %137 : vector<8x1xf32>
    %139 = vector.broadcast %138 : vector<8x1xf32> to vector<8x16xf32>
    %140 = arith.mulf %130, %139 : vector<8x16xf32>
    %141 = vector.broadcast %21 : vector<1x16xf32> to vector<8x16xf32>
    %142 = arith.mulf %140, %141 : vector<8x16xf32>
    %143 = vector.broadcast %22 : vector<1x16xf32> to vector<8x16xf32>
    %144 = arith.addf %142, %143 : vector<8x16xf32>
    %c1 = arith.constant 1 : index
    %c0_53 = arith.constant 0 : index
    %c0_54 = arith.constant 0 : index
    %c0_55 = arith.constant 0 : index
    %145 = vector.load %arg3[%c1, %c0_53, %c0_54, %c0_55] : memref<2x3x16x16xbf16, #tpu.memory_space<vmem>>, vector<1x3x16x16xbf16>
    %146 = vector.shape_cast %145 : vector<1x3x16x16xbf16> to vector<3x16x16xbf16>
    %c1_56 = arith.constant 1 : index
    %c0_57 = arith.constant 0 : index
    %c0_58 = arith.constant 0 : index
    %147 = vector.load %arg8[%c1_56, %c0_57, %c0_58] : memref<2x9x16xf32, #tpu.memory_space<vmem>>, vector<1x9x16xf32>
    %148 = vector.shape_cast %147 : vector<1x9x16xf32> to vector<9x16xf32>
    %149 = vector.extract_strided_slice %148 {offsets = [0, 0], sizes = [1, 16], strides = [1, 1]} : vector<9x16xf32> to vector<1x16xf32>
    %150 = vector.extract_strided_slice %148 {offsets = [1, 0], sizes = [1, 16], strides = [1, 1]} : vector<9x16xf32> to vector<1x16xf32>
    %151 = vector.extract_strided_slice %148 {offsets = [2, 0], sizes = [1, 16], strides = [1, 1]} : vector<9x16xf32> to vector<1x16xf32>
    %152 = vector.extract_strided_slice %148 {offsets = [3, 0], sizes = [1, 16], strides = [1, 1]} : vector<9x16xf32> to vector<1x16xf32>
    %153 = vector.extract_strided_slice %148 {offsets = [4, 0], sizes = [1, 16], strides = [1, 1]} : vector<9x16xf32> to vector<1x16xf32>
    %154 = vector.extract_strided_slice %148 {offsets = [5, 0], sizes = [1, 16], strides = [1, 1]} : vector<9x16xf32> to vector<1x16xf32>
    %155 = vector.extract_strided_slice %148 {offsets = [6, 0], sizes = [1, 16], strides = [1, 1]} : vector<9x16xf32> to vector<1x16xf32>
    %156 = vector.extract_strided_slice %148 {offsets = [7, 0], sizes = [1, 16], strides = [1, 1]} : vector<9x16xf32> to vector<1x16xf32>
    %157 = vector.extract_strided_slice %148 {offsets = [8, 0], sizes = [1, 16], strides = [1, 1]} : vector<9x16xf32> to vector<1x16xf32>
    %158 = arith.truncf %144 : vector<8x16xf32> to vector<8x16xbf16>
    %159 = vector.extract_strided_slice %146 {offsets = [0, 0, 0], sizes = [1, 16, 16], strides = [1, 1, 1]} : vector<3x16x16xbf16> to vector<1x16x16xbf16>
    %160 = vector.shape_cast %159 : vector<1x16x16xbf16> to vector<16x16xbf16>
    %cst_59 = arith.constant dense<0.000000e+00> : vector<8x16xf32>
    %161 = tpu.matmul %158, %160, %cst_59 {dimension_numbers = #tpu.dot_dimension_numbers<[1], [0], [0], [1], [0, 0, 1, 1], [], []>} : vector<8x16xbf16>, vector<16x16xbf16>, vector<8x16xf32> -> vector<8x16xf32>
    %162 = vector.broadcast %149 : vector<1x16xf32> to vector<8x16xf32>
    %163 = arith.addf %161, %162 : vector<8x16xf32>
    %cst_60 = arith.constant 0.353553385 : f32
    %164 = vector.broadcast %cst_60 : f32 to vector<8x16xf32>
    %165 = arith.mulf %163, %164 : vector<8x16xf32>
    %166 = vector.extract_strided_slice %146 {offsets = [1, 0, 0], sizes = [1, 16, 16], strides = [1, 1, 1]} : vector<3x16x16xbf16> to vector<1x16x16xbf16>
    %167 = vector.shape_cast %166 : vector<1x16x16xbf16> to vector<16x16xbf16>
    %cst_61 = arith.constant dense<0.000000e+00> : vector<8x16xf32>
    %168 = tpu.matmul %158, %167, %cst_61 {dimension_numbers = #tpu.dot_dimension_numbers<[1], [0], [0], [1], [0, 0, 1, 1], [], []>} : vector<8x16xbf16>, vector<16x16xbf16>, vector<8x16xf32> -> vector<8x16xf32>
    %169 = vector.broadcast %150 : vector<1x16xf32> to vector<8x16xf32>
    %170 = arith.addf %168, %169 : vector<8x16xf32>
    %171 = vector.extract_strided_slice %146 {offsets = [2, 0, 0], sizes = [1, 16, 16], strides = [1, 1, 1]} : vector<3x16x16xbf16> to vector<1x16x16xbf16>
    %172 = vector.shape_cast %171 : vector<1x16x16xbf16> to vector<16x16xbf16>
    %cst_62 = arith.constant dense<0.000000e+00> : vector<8x16xf32>
    %173 = tpu.matmul %158, %172, %cst_62 {dimension_numbers = #tpu.dot_dimension_numbers<[1], [0], [0], [1], [0, 0, 1, 1], [], []>} : vector<8x16xbf16>, vector<16x16xbf16>, vector<8x16xf32> -> vector<8x16xf32>
    %174 = vector.broadcast %151 : vector<1x16xf32> to vector<8x16xf32>
    %175 = arith.addf %173, %174 : vector<8x16xf32>
    %176 = vector.extract_strided_slice %165 {offsets = [0, 0], sizes = [8, 8], strides = [1, 1]} : vector<8x16xf32> to vector<8x8xf32>
    %177 = arith.truncf %176 : vector<8x8xf32> to vector<8x8xbf16>
    %178 = vector.extract_strided_slice %170 {offsets = [0, 0], sizes = [8, 8], strides = [1, 1]} : vector<8x16xf32> to vector<8x8xf32>
    %179 = arith.truncf %178 : vector<8x8xf32> to vector<8x8xbf16>
    %180 = vector.extract_strided_slice %175 {offsets = [0, 0], sizes = [8, 8], strides = [1, 1]} : vector<8x16xf32> to vector<8x8xf32>
    %181 = arith.truncf %180 : vector<8x8xf32> to vector<8x8xbf16>
    %cst_63 = arith.constant dense<0.000000e+00> : vector<8x8xf32>
    %182 = tpu.matmul %177, %179, %cst_63 {dimension_numbers = #tpu.dot_dimension_numbers<[1], [1], [0], [0], [0, 0, 1, 0], [], []>} : vector<8x8xbf16>, vector<8x8xbf16>, vector<8x8xf32> -> vector<8x8xf32>
    %cst_64 = arith.constant dense<0xFF800000> : vector<8xf32>
    %183 = vector.multi_reduction <maximumf>, %182, %cst_64 [1] : vector<8x8xf32> to vector<8xf32>
    %184 = vector.shape_cast %183 : vector<8xf32> to vector<8x1xf32>
    %185 = vector.broadcast %184 : vector<8x1xf32> to vector<8x8xf32>
    %186 = arith.subf %182, %185 : vector<8x8xf32>
    %187 = math.exp %186 : vector<8x8xf32>
    %cst_65 = arith.constant dense<0.000000e+00> : vector<8xf32>
    %188 = vector.multi_reduction <add>, %187, %cst_65 [1] : vector<8x8xf32> to vector<8xf32>
    %189 = vector.shape_cast %188 : vector<8xf32> to vector<8x1xf32>
    %190 = tpu.reciprocal %189 {approx = true} : vector<8x1xf32> -> vector<8x1xf32>
    %191 = vector.broadcast %190 : vector<8x1xf32> to vector<8x8xf32>
    %192 = arith.mulf %187, %191 : vector<8x8xf32>
    %193 = arith.truncf %192 : vector<8x8xf32> to vector<8x8xbf16>
    %cst_66 = arith.constant dense<0.000000e+00> : vector<8x8xf32>
    %194 = tpu.matmul %193, %181, %cst_66 {dimension_numbers = #tpu.dot_dimension_numbers<[1], [0], [0], [1], [0, 0, 1, 1], [], []>} : vector<8x8xbf16>, vector<8x8xbf16>, vector<8x8xf32> -> vector<8x8xf32>
    %c0_67 = arith.constant 0 : index
    %c0_68 = arith.constant 0 : index
    %195 = vector.load %arg12[%c0_67, %c0_68] : memref<8x16xf32, #tpu.memory_space<vmem>>, vector<8x8xf32>
    tpu.vector_store %arg12[%c0_67, %c0_68], %194 {strides = array<i32>} : memref<8x16xf32, #tpu.memory_space<vmem>>, vector<8x8xf32>,
    %196 = vector.extract_strided_slice %165 {offsets = [0, 8], sizes = [8, 8], strides = [1, 1]} : vector<8x16xf32> to vector<8x8xf32>
    %197 = arith.truncf %196 : vector<8x8xf32> to vector<8x8xbf16>
    %198 = vector.extract_strided_slice %170 {offsets = [0, 8], sizes = [8, 8], strides = [1, 1]} : vector<8x16xf32> to vector<8x8xf32>
    %199 = arith.truncf %198 : vector<8x8xf32> to vector<8x8xbf16>
    %200 = vector.extract_strided_slice %175 {offsets = [0, 8], sizes = [8, 8], strides = [1, 1]} : vector<8x16xf32> to vector<8x8xf32>
    %201 = arith.truncf %200 : vector<8x8xf32> to vector<8x8xbf16>
    %cst_69 = arith.constant dense<0.000000e+00> : vector<8x8xf32>
    %202 = tpu.matmul %197, %199, %cst_69 {dimension_numbers = #tpu.dot_dimension_numbers<[1], [1], [0], [0], [0, 0, 1, 0], [], []>} : vector<8x8xbf16>, vector<8x8xbf16>, vector<8x8xf32> -> vector<8x8xf32>
    %cst_70 = arith.constant dense<0xFF800000> : vector<8xf32>
    %203 = vector.multi_reduction <maximumf>, %202, %cst_70 [1] : vector<8x8xf32> to vector<8xf32>
    %204 = vector.shape_cast %203 : vector<8xf32> to vector<8x1xf32>
    %205 = vector.broadcast %204 : vector<8x1xf32> to vector<8x8xf32>
    %206 = arith.subf %202, %205 : vector<8x8xf32>
    %207 = math.exp %206 : vector<8x8xf32>
    %cst_71 = arith.constant dense<0.000000e+00> : vector<8xf32>
    %208 = vector.multi_reduction <add>, %207, %cst_71 [1] : vector<8x8xf32> to vector<8xf32>
    %209 = vector.shape_cast %208 : vector<8xf32> to vector<8x1xf32>
    %210 = tpu.reciprocal %209 {approx = true} : vector<8x1xf32> -> vector<8x1xf32>
    %211 = vector.broadcast %210 : vector<8x1xf32> to vector<8x8xf32>
    %212 = arith.mulf %207, %211 : vector<8x8xf32>
    %213 = arith.truncf %212 : vector<8x8xf32> to vector<8x8xbf16>
    %cst_72 = arith.constant dense<0.000000e+00> : vector<8x8xf32>
    %214 = tpu.matmul %213, %201, %cst_72 {dimension_numbers = #tpu.dot_dimension_numbers<[1], [0], [0], [1], [0, 0, 1, 1], [], []>} : vector<8x8xbf16>, vector<8x8xbf16>, vector<8x8xf32> -> vector<8x8xf32>
    %c0_73 = arith.constant 0 : index
    %c8_74 = arith.constant 8 : index
    %215 = vector.load %arg12[%c0_73, %c8_74] : memref<8x16xf32, #tpu.memory_space<vmem>>, vector<8x8xf32>
    tpu.vector_store %arg12[%c0_73, %c8_74], %214 {strides = array<i32>} : memref<8x16xf32, #tpu.memory_space<vmem>>, vector<8x8xf32>,
    %c0_75 = arith.constant 0 : index
    %c0_76 = arith.constant 0 : index
    %216 = vector.load %arg12[%c0_75, %c0_76] : memref<8x16xf32, #tpu.memory_space<vmem>>, vector<8x16xf32>
    %217 = arith.truncf %216 : vector<8x16xf32> to vector<8x16xbf16>
    %c1_77 = arith.constant 1 : index
    %c0_78 = arith.constant 0 : index
    %c0_79 = arith.constant 0 : index
    %218 = vector.load %arg4[%c1_77, %c0_78, %c0_79] : memref<2x16x16xbf16, #tpu.memory_space<vmem>>, vector<1x16x16xbf16>
    %219 = vector.shape_cast %218 : vector<1x16x16xbf16> to vector<16x16xbf16>
    %cst_80 = arith.constant dense<0.000000e+00> : vector<8x16xf32>
    %220 = tpu.matmul %217, %219, %cst_80 {dimension_numbers = #tpu.dot_dimension_numbers<[1], [0], [0], [1], [0, 0, 1, 1], [], []>} : vector<8x16xbf16>, vector<16x16xbf16>, vector<8x16xf32> -> vector<8x16xf32>
    %221 = vector.broadcast %152 : vector<1x16xf32> to vector<8x16xf32>
    %222 = arith.addf %220, %221 : vector<8x16xf32>
    %223 = arith.addf %144, %222 : vector<8x16xf32>
    %cst_81 = arith.constant dense<0.000000e+00> : vector<8xf32>
    %224 = vector.multi_reduction <add>, %223, %cst_81 [1] : vector<8x16xf32> to vector<8xf32>
    %225 = vector.shape_cast %224 : vector<8xf32> to vector<8x1xf32>
    %cst_82 = arith.constant 1.600000e+01 : f32
    %226 = vector.broadcast %cst_82 : f32 to vector<8x1xf32>
    %227 = arith.divf %225, %226 : vector<8x1xf32>
    %228 = vector.broadcast %227 : vector<8x1xf32> to vector<8x16xf32>
    %229 = arith.subf %223, %228 : vector<8x16xf32>
    %230 = arith.mulf %229, %229 : vector<8x16xf32>
    %cst_83 = arith.constant dense<0.000000e+00> : vector<8xf32>
    %231 = vector.multi_reduction <add>, %230, %cst_83 [1] : vector<8x16xf32> to vector<8xf32>
    %232 = vector.shape_cast %231 : vector<8xf32> to vector<8x1xf32>
    %cst_84 = arith.constant 1.600000e+01 : f32
    %233 = vector.broadcast %cst_84 : f32 to vector<8x1xf32>
    %234 = arith.divf %232, %233 : vector<8x1xf32>
    %cst_85 = arith.constant 9.99999974E-6 : f32
    %235 = vector.broadcast %cst_85 : f32 to vector<8x1xf32>
    %236 = arith.addf %234, %235 : vector<8x1xf32>
    %237 = math.rsqrt %236 : vector<8x1xf32>
    %238 = vector.broadcast %237 : vector<8x1xf32> to vector<8x16xf32>
    %239 = arith.mulf %229, %238 : vector<8x16xf32>
    %240 = vector.broadcast %153 : vector<1x16xf32> to vector<8x16xf32>
    %241 = arith.mulf %239, %240 : vector<8x16xf32>
    %242 = vector.broadcast %154 : vector<1x16xf32> to vector<8x16xf32>
    %243 = arith.addf %241, %242 : vector<8x16xf32>
    %244 = arith.truncf %243 : vector<8x16xf32> to vector<8x16xbf16>
    %c1_86 = arith.constant 1 : index
    %c0_87 = arith.constant 0 : index
    %c0_88 = arith.constant 0 : index
    %245 = vector.load %arg5[%c1_86, %c0_87, %c0_88] : memref<2x16x32xbf16, #tpu.memory_space<vmem>>, vector<1x16x32xbf16>
    %246 = vector.shape_cast %245 : vector<1x16x32xbf16> to vector<16x32xbf16>
    %cst_89 = arith.constant dense<0.000000e+00> : vector<8x32xf32>
    %247 = tpu.matmul %244, %246, %cst_89 {dimension_numbers = #tpu.dot_dimension_numbers<[1], [0], [0], [1], [0, 0, 1, 1], [], []>} : vector<8x16xbf16>, vector<16x32xbf16>, vector<8x32xf32> -> vector<8x32xf32>
    %c1_90 = arith.constant 1 : index
    %c0_91 = arith.constant 0 : index
    %248 = vector.load %arg6[%c1_90, %c0_91] : memref<2x32xf32, #tpu.memory_space<vmem>>, vector<1x32xf32>
    %249 = vector.broadcast %248 : vector<1x32xf32> to vector<8x32xf32>
    %250 = arith.addf %247, %249 : vector<8x32xf32>
    %cst_92 = arith.constant 0.000000e+00 : f32
    %251 = vector.broadcast %cst_92 : f32 to vector<8x32xf32>
    %252 = arith.maximumf %250, %251 : vector<8x32xf32>
    %253 = arith.truncf %252 : vector<8x32xf32> to vector<8x32xbf16>
    %c1_93 = arith.constant 1 : index
    %c0_94 = arith.constant 0 : index
    %c0_95 = arith.constant 0 : index
    %254 = vector.load %arg7[%c1_93, %c0_94, %c0_95] : memref<2x32x16xbf16, #tpu.memory_space<vmem>>, vector<1x32x16xbf16>
    %255 = vector.shape_cast %254 : vector<1x32x16xbf16> to vector<32x16xbf16>
    %cst_96 = arith.constant dense<0.000000e+00> : vector<8x16xf32>
    %256 = tpu.matmul %253, %255, %cst_96 {dimension_numbers = #tpu.dot_dimension_numbers<[1], [0], [0], [1], [0, 0, 1, 1], [], []>} : vector<8x32xbf16>, vector<32x16xbf16>, vector<8x16xf32> -> vector<8x16xf32>
    %257 = vector.broadcast %155 : vector<1x16xf32> to vector<8x16xf32>
    %258 = arith.addf %256, %257 : vector<8x16xf32>
    %259 = arith.addf %243, %258 : vector<8x16xf32>
    %cst_97 = arith.constant dense<0.000000e+00> : vector<8xf32>
    %260 = vector.multi_reduction <add>, %259, %cst_97 [1] : vector<8x16xf32> to vector<8xf32>
    %261 = vector.shape_cast %260 : vector<8xf32> to vector<8x1xf32>
    %cst_98 = arith.constant 1.600000e+01 : f32
    %262 = vector.broadcast %cst_98 : f32 to vector<8x1xf32>
    %263 = arith.divf %261, %262 : vector<8x1xf32>
    %264 = vector.broadcast %263 : vector<8x1xf32> to vector<8x16xf32>
    %265 = arith.subf %259, %264 : vector<8x16xf32>
    %266 = arith.mulf %265, %265 : vector<8x16xf32>
    %cst_99 = arith.constant dense<0.000000e+00> : vector<8xf32>
    %267 = vector.multi_reduction <add>, %266, %cst_99 [1] : vector<8x16xf32> to vector<8xf32>
    %268 = vector.shape_cast %267 : vector<8xf32> to vector<8x1xf32>
    %cst_100 = arith.constant 1.600000e+01 : f32
    %269 = vector.broadcast %cst_100 : f32 to vector<8x1xf32>
    %270 = arith.divf %268, %269 : vector<8x1xf32>
    %cst_101 = arith.constant 9.99999974E-6 : f32
    %271 = vector.broadcast %cst_101 : f32 to vector<8x1xf32>
    %272 = arith.addf %270, %271 : vector<8x1xf32>
    %273 = math.rsqrt %272 : vector<8x1xf32>
    %274 = vector.broadcast %273 : vector<8x1xf32> to vector<8x16xf32>
    %275 = arith.mulf %265, %274 : vector<8x16xf32>
    %276 = vector.broadcast %156 : vector<1x16xf32> to vector<8x16xf32>
    %277 = arith.mulf %275, %276 : vector<8x16xf32>
    %278 = vector.broadcast %157 : vector<1x16xf32> to vector<8x16xf32>
    %279 = arith.addf %277, %278 : vector<8x16xf32>
    %280 = vector.extract_strided_slice %279 {offsets = [7, 0], sizes = [1, 16], strides = [1, 1]} : vector<8x16xf32> to vector<1x16xf32>
    %281 = arith.truncf %280 : vector<1x16xf32> to vector<1x16xbf16>
    %c0_102 = arith.constant 0 : index
    %c0_103 = arith.constant 0 : index
    %282 = vector.load %arg9[%c0_102, %c0_103] : memref<16x128xbf16, #tpu.memory_space<vmem>>, vector<16x128xbf16>
    %cst_104 = arith.constant dense<0.000000e+00> : vector<1x128xf32>
    %283 = tpu.matmul %281, %282, %cst_104 {dimension_numbers = #tpu.dot_dimension_numbers<[1], [0], [0], [1], [0, 0, 1, 1], [], []>} : vector<1x16xbf16>, vector<16x128xbf16>, vector<1x128xf32> -> vector<1x128xf32>
    %c0_105 = arith.constant 0 : index
    %c0_106 = arith.constant 0 : index
    %284 = vector.load %arg10[%c0_105, %c0_106] : memref<1x128xf32, #tpu.memory_space<vmem>>, vector<1x128xf32>
    %285 = arith.addf %283, %284 : vector<1x128xf32>
    %286 = vector.shape_cast %285 : vector<1x128xf32> to vector<1x1x128xf32>
    %c0_107 = arith.constant 0 : index
    %c0_108 = arith.constant 0 : index
    %c0_109 = arith.constant 0 : index
    %287 = vector.load %arg11[%c0_107, %c0_108, %c0_109] : memref<1x1x128xf32, #tpu.memory_space<vmem>>, vector<1x1x128xf32>
    tpu.vector_store %arg11[%c0_107, %c0_108, %c0_109], %286 {strides = array<i32>} : memref<1x1x128xf32, #tpu.memory_space<vmem>>, vector<1x1x128xf32>,
    return
  }
  func.func @transform_0(%arg0: i32) -> (i32, i32, i32) {
    %c0_i32 = arith.constant 0 : i32
    %c0_i32_0 = arith.constant 0 : i32
    %c0_i32_1 = arith.constant 0 : i32
    return %arg0, %c0_i32, %c0_i32_0 : i32, i32, i32
  }
  func.func @transform_1(%arg0: i32) -> (i32, i32) {
    %c0_i32 = arith.constant 0 : i32
    %c0_i32_0 = arith.constant 0 : i32
    %c0_i32_1 = arith.constant 0 : i32
    return %c0_i32, %c0_i32_0 : i32, i32
  }
  func.func @transform_2(%arg0: i32) -> (i32, i32, i32, i32) {
    %c0_i32 = arith.constant 0 : i32
    %c0_i32_0 = arith.constant 0 : i32
    %c0_i32_1 = arith.constant 0 : i32
    %c0_i32_2 = arith.constant 0 : i32
    %c0_i32_3 = arith.constant 0 : i32
    return %c0_i32, %c0_i32_0, %c0_i32_1, %c0_i32_2 : i32, i32, i32, i32
  }
  func.func @transform_3(%arg0: i32) -> (i32, i32, i32) {
    %c0_i32 = arith.constant 0 : i32
    %c0_i32_0 = arith.constant 0 : i32
    %c0_i32_1 = arith.constant 0 : i32
    %c0_i32_2 = arith.constant 0 : i32
    return %c0_i32, %c0_i32_0, %c0_i32_1 : i32, i32, i32
  }
  func.func @transform_4(%arg0: i32) -> (i32, i32, i32) {
    %c0_i32 = arith.constant 0 : i32
    %c0_i32_0 = arith.constant 0 : i32
    %c0_i32_1 = arith.constant 0 : i32
    %c0_i32_2 = arith.constant 0 : i32
    return %c0_i32, %c0_i32_0, %c0_i32_1 : i32, i32, i32
  }
  func.func @transform_5(%arg0: i32) -> (i32, i32) {
    %c0_i32 = arith.constant 0 : i32
    %c0_i32_0 = arith.constant 0 : i32
    %c0_i32_1 = arith.constant 0 : i32
    return %c0_i32, %c0_i32_0 : i32, i32
  }
  func.func @transform_6(%arg0: i32) -> (i32, i32, i32) {
    %c0_i32 = arith.constant 0 : i32
    %c0_i32_0 = arith.constant 0 : i32
    %c0_i32_1 = arith.constant 0 : i32
    %c0_i32_2 = arith.constant 0 : i32
    return %c0_i32, %c0_i32_0, %c0_i32_1 : i32, i32, i32
  }
  func.func @transform_7(%arg0: i32) -> (i32, i32, i32) {
    %c0_i32 = arith.constant 0 : i32
    %c0_i32_0 = arith.constant 0 : i32
    %c0_i32_1 = arith.constant 0 : i32
    %c0_i32_2 = arith.constant 0 : i32
    return %c0_i32, %c0_i32_0, %c0_i32_1 : i32, i32, i32
  }
  func.func @transform_8(%arg0: i32) -> (i32, i32) {
    %c0_i32 = arith.constant 0 : i32
    %c0_i32_0 = arith.constant 0 : i32
    %c0_i32_1 = arith.constant 0 : i32
    return %c0_i32, %c0_i32_0 : i32, i32
  }
  func.func @transform_9(%arg0: i32) -> (i32, i32) {
    %c0_i32 = arith.constant 0 : i32
    %c0_i32_0 = arith.constant 0 : i32
    %c0_i32_1 = arith.constant 0 : i32
    return %c0_i32, %c0_i32_0 : i32, i32
  }
  func.func @transform_10(%arg0: i32) -> (i32, i32, i32) {
    %c0_i32 = arith.constant 0 : i32
    %c0_i32_0 = arith.constant 0 : i32
    %c0_i32_1 = arith.constant 0 : i32
    return %arg0, %c0_i32, %c0_i32_0 : i32, i32, i32
  }
}

</mosaic_0001>

<llo_original>
// kernel: tpu_custom_call.1
$region0: #{tpu_custom_call.1}
  #allocation0 [shape = 'u32[]', space=smem, size = 0x4, offset = 0x4, fixed_abs, tag = 'smem constant byte address 0x4 - core index']
  #allocation1 [shape = 'u32[72,128]{1,0:T(1,128)}', space=vmem, size = 0x9000, scoped, tag = 'internal scratch']
  #allocation2 [shape = 'f32[8,16]{1,0:T(8,128)}', space=vmem, size = 0x1000, scoped, tag = 'scratch operand']
  %s0 = inlined_call_operand.vmem [shape: s32[2,8,1], index: 0, kind: input, shape index: {}]
  %s1 = inlined_call_operand.vmem [shape: bf16[20,16], index: 1, kind: input, shape index: {}]
  %s2 = inlined_call_operand.vmem [shape: bf16[2,3,16,16], index: 2, kind: input, shape index: {}]
  %s3 = inlined_call_operand.vmem [shape: bf16[2,16,16], index: 3, kind: input, shape index: {}]
  %s4 = inlined_call_operand.vmem [shape: bf16[2,16,32], index: 4, kind: input, shape index: {}]
  %s5 = inlined_call_operand.vmem [shape: f32[2,32], index: 5, kind: input, shape index: {}]
  %s6 = inlined_call_operand.vmem [shape: bf16[2,32,16], index: 6, kind: input, shape index: {}]
  %s7 = inlined_call_operand.vmem [shape: f32[2,9,16], index: 7, kind: input, shape index: {}]
  %s8 = inlined_call_operand.vmem [shape: bf16[16,128], index: 8, kind: input, shape index: {}]
  %s9 = inlined_call_operand.vmem [shape: f32[1,128], index: 9, kind: input, shape index: {}]
  %s10 = inlined_call_operand.hbm [shape: f32[2,1,128], index: 10, kind: output, shape index: {}]
  %s11 = sld [smem:[#allocation0]]
  $region73: #{tpu_custom_call.1} parent=0
    _
  %s13 = ssub.s32 1, %s11
  %s14 = scalar_select 0, %s13, %s11
  $region1: #{tpu_custom_call.1} parent=0
    #allocation3 [shape = 'u8[1024]{0}', space=vmem, size = 0x400, scoped, tag = 'output window, operand 0']
    #allocation4 [shape = 's32[2]{0}', space=sflag, size = 0x8, scoped, tag = 'scoped memory for tpu_custom_call.1']
    %15 = vsyncpa [#allocation4], 0
    %s16 = scalar_lea.sflag [#allocation4], 1
    %17 = vsyncpa %s16, 0
    loop: start=0, step=1, limit=4
    $region2: #{tpu_custom_call.1} parent=1 // loop_pre_header
      _
    $region3: #{tpu_custom_call.1} parent=1 // loop_header
      %s19 = sphi 0, %s23
      %p20 = scmp.ge.s32.totalorder %s19, 4
      %s29 = sphi 0, %s31
      %s32 = sphi 0, %s29
      %s33 = sphi 0, %s32
      %s49 = sphi 0, %s33
      %s53 = sphi 0, %s53
      %s55 = sphi 0, %s53
      %s56 = sphi 0, %s55
      %s70 = sphi 0, %s56
      %s74 = sphi 0, %s74
      %s76 = sphi 0, %s74
      %s77 = sphi 0, %s76
      %s91 = sphi 0, %s77
      %s95 = sphi 0, %s95
      %s97 = sphi 0, %s95
      %s98 = sphi 0, %s97
      %s112 = sphi 0, %s98
      %s116 = sphi 0, %s116
      %s118 = sphi 0, %s116
      %s119 = sphi 0, %s118
      %s133 = sphi 0, %s119
      %s137 = sphi 0, %s137
      %s139 = sphi 0, %s137
      %s140 = sphi 0, %s139
      %s154 = sphi 0, %s140
      %s158 = sphi 0, %s158
      %s160 = sphi 0, %s158
      %s161 = sphi 0, %s160
      %s175 = sphi 0, %s161
      %s179 = sphi 0, %s179
      %s181 = sphi 0, %s179
      %s182 = sphi 0, %s181
      %s196 = sphi 0, %s182
      %s200 = sphi 0, %s200
      %s202 = sphi 0, %s200
      %s203 = sphi 0, %s202
      %s217 = sphi 0, %s203
      %s221 = sphi 0, %s221
      %s223 = sphi 0, %s221
      %s224 = sphi 0, %s223
      %s238 = sphi 0, %s224
      %s244 = sphi 0, %s246
      %s247 = sphi 0, %s244
      %s248 = sphi 0, %s247
      %s264 = sphi 0, %s248
    $region4: #{tpu_custom_call.1} parent=1 // loop_header_branch
      %22 = sbr.rel (%p20) target = $region8
    $region5: #{tpu_custom_call.1} parent=1 // loop_body
      %s24 = ssub.s32 %s19, 1
      %s25 = ssub.s32 %s19, 2
      %s26 = sadd.s32 %s19, 1
      %s27 = ssub.s32 %s19, %s26
      %p28 = scmp.eq.s32.totalorder %s27, 0
      %s30 = sadd.s32 %s29, 1
      %s31 = scalar_select %p28, %s29, %s30
      %p34 = pneg %p28
      %p35 = scmp.eq.s32.totalorder %s19, 1
      %p36 = por %p34, %p35
      %p37 = scmp.ne.s32.totalorder %s29, %s32
      %p38 = scmp.eq.s32.totalorder %s19, 0
      %p39 = por %p37, %p38
      %p40 = scmp.ne.s32.totalorder %s29, %s32
      %p41 = scmp.eq.s32.totalorder %s24, 1
      %p42 = por %p40, %p41
      %p43 = scmp.ne.s32.totalorder %s32, %s33
      %p44 = scmp.eq.s32.totalorder %s24, 0
      %p45 = por %p43, %p44
      %p46 = scmp.ne.s32.totalorder %s32, %s33
      %p47 = scmp.eq.s32.totalorder %s25, 1
      %p48 = por %p46, %p47
      %p50 = scmp.ne.s32.totalorder %s33, %s49
      %p51 = scmp.eq.s32.totalorder %s25, 0
      %p52 = por %p50, %p51
      %s54 = sadd.s32 %s53, 1
      %p57 = scmp.eq.s32.totalorder %s19, 1
      %p58 = scmp.ne.s32.totalorder %s53, %s55
      %p59 = scmp.eq.s32.totalorder %s19, 0
      %p60 = por %p58, %p59
      %p61 = scmp.ne.s32.totalorder %s53, %s55
      %p62 = scmp.eq.s32.totalorder %s24, 1
      %p63 = por %p61, %p62
      %p64 = scmp.ne.s32.totalorder %s55, %s56
      %p65 = scmp.eq.s32.totalorder %s24, 0
      %p66 = por %p64, %p65
      %p67 = scmp.ne.s32.totalorder %s55, %s56
      %p68 = scmp.eq.s32.totalorder %s25, 1
      %p69 = por %p67, %p68
      %p71 = scmp.ne.s32.totalorder %s56, %s70
      %p72 = scmp.eq.s32.totalorder %s25, 0
      %p73 = por %p71, %p72
      %s75 = sadd.s32 %s74, 1
      %p78 = scmp.eq.s32.totalorder %s19, 1
      %p79 = scmp.ne.s32.totalorder %s74, %s76
      %p80 = scmp.eq.s32.totalorder %s19, 0
      %p81 = por %p79, %p80
      %p82 = scmp.ne.s32.totalorder %s74, %s76
      %p83 = scmp.eq.s32.totalorder %s24, 1
      %p84 = por %p82, %p83
      %p85 = scmp.ne.s32.totalorder %s76, %s77
      %p86 = scmp.eq.s32.totalorder %s24, 0
      %p87 = por %p85, %p86
      %p88 = scmp.ne.s32.totalorder %s76, %s77
      %p89 = scmp.eq.s32.totalorder %s25, 1
      %p90 = por %p88, %p89
      %p92 = scmp.ne.s32.totalorder %s77, %s91
      %p93 = scmp.eq.s32.totalorder %s25, 0
      %p94 = por %p92, %p93
      %s96 = sadd.s32 %s95, 1
      %p99 = scmp.eq.s32.totalorder %s19, 1
      %p100 = scmp.ne.s32.totalorder %s95, %s97
      %p101 = scmp.eq.s32.totalorder %s19, 0
      %p102 = por %p100, %p101
      %p103 = scmp.ne.s32.totalorder %s95, %s97
      %p104 = scmp.eq.s32.totalorder %s24, 1
      %p105 = por %p103, %p104
      %p106 = scmp.ne.s32.totalorder %s97, %s98
      %p107 = scmp.eq.s32.totalorder %s24, 0
      %p108 = por %p106, %p107
      %p109 = scmp.ne.s32.totalorder %s97, %s98
      %p110 = scmp.eq.s32.totalorder %s25, 1
      %p111 = por %p109, %p110
      %p113 = scmp.ne.s32.totalorder %s98, %s112
      %p114 = scmp.eq.s32.totalorder %s25, 0
      %p115 = por %p113, %p114
      %s117 = sadd.s32 %s116, 1
      %p120 = scmp.eq.s32.totalorder %s19, 1
      %p121 = scmp.ne.s32.totalorder %s116, %s118
      %p122 = scmp.eq.s32.totalorder %s19, 0
      %p123 = por %p121, %p122
      %p124 = scmp.ne.s32.totalorder %s116, %s118
      %p125 = scmp.eq.s32.totalorder %s24, 1
      %p126 = por %p124, %p125
      %p127 = scmp.ne.s32.totalorder %s118, %s119
      %p128 = scmp.eq.s32.totalorder %s24, 0
      %p129 = por %p127, %p128
      %p130 = scmp.ne.s32.totalorder %s118, %s119
      %p131 = scmp.eq.s32.totalorder %s25, 1
      %p132 = por %p130, %p131
      %p134 = scmp.ne.s32.totalorder %s119, %s133
      %p135 = scmp.eq.s32.totalorder %s25, 0
      %p136 = por %p134, %p135
      %s138 = sadd.s32 %s137, 1
      %p141 = scmp.eq.s32.totalorder %s19, 1
      %p142 = scmp.ne.s32.totalorder %s137, %s139
      %p143 = scmp.eq.s32.totalorder %s19, 0
      %p144 = por %p142, %p143
      %p145 = scmp.ne.s32.totalorder %s137, %s139
      %p146 = scmp.eq.s32.totalorder %s24, 1
      %p147 = por %p145, %p146
      %p148 = scmp.ne.s32.totalorder %s139, %s140
      %p149 = scmp.eq.s32.totalorder %s24, 0
      %p150 = por %p148, %p149
      %p151 = scmp.ne.s32.totalorder %s139, %s140
      %p152 = scmp.eq.s32.totalorder %s25, 1
      %p153 = por %p151, %p152
      %p155 = scmp.ne.s32.totalorder %s140, %s154
      %p156 = scmp.eq.s32.totalorder %s25, 0
      %p157 = por %p155, %p156
      %s159 = sadd.s32 %s158, 1
      %p162 = scmp.eq.s32.totalorder %s19, 1
      %p163 = scmp.ne.s32.totalorder %s158, %s160
      %p164 = scmp.eq.s32.totalorder %s19, 0
      %p165 = por %p163, %p164
      %p166 = scmp.ne.s32.totalorder %s158, %s160
      %p167 = scmp.eq.s32.totalorder %s24, 1
      %p168 = por %p166, %p167
      %p169 = scmp.ne.s32.totalorder %s160, %s161
      %p170 = scmp.eq.s32.totalorder %s24, 0
      %p171 = por %p169, %p170
      %p172 = scmp.ne.s32.totalorder %s160, %s161
      %p173 = scmp.eq.s32.totalorder %s25, 1
      %p174 = por %p172, %p173
      %p176 = scmp.ne.s32.totalorder %s161, %s175
      %p177 = scmp.eq.s32.totalorder %s25, 0
      %p178 = por %p176, %p177
      %s180 = sadd.s32 %s179, 1
      %p183 = scmp.eq.s32.totalorder %s19, 1
      %p184 = scmp.ne.s32.totalorder %s179, %s181
      %p185 = scmp.eq.s32.totalorder %s19, 0
      %p186 = por %p184, %p185
      %p187 = scmp.ne.s32.totalorder %s179, %s181
      %p188 = scmp.eq.s32.totalorder %s24, 1
      %p189 = por %p187, %p188
      %p190 = scmp.ne.s32.totalorder %s181, %s182
      %p191 = scmp.eq.s32.totalorder %s24, 0
      %p192 = por %p190, %p191
      %p193 = scmp.ne.s32.totalorder %s181, %s182
      %p194 = scmp.eq.s32.totalorder %s25, 1
      %p195 = por %p193, %p194
      %p197 = scmp.ne.s32.totalorder %s182, %s196
      %p198 = scmp.eq.s32.totalorder %s25, 0
      %p199 = por %p197, %p198
      %s201 = sadd.s32 %s200, 1
      %p204 = scmp.eq.s32.totalorder %s19, 1
      %p205 = scmp.ne.s32.totalorder %s200, %s202
      %p206 = scmp.eq.s32.totalorder %s19, 0
      %p207 = por %p205, %p206
      %p208 = scmp.ne.s32.totalorder %s200, %s202
      %p209 = scmp.eq.s32.totalorder %s24, 1
      %p210 = por %p208, %p209
      %p211 = scmp.ne.s32.totalorder %s202, %s203
      %p212 = scmp.eq.s32.totalorder %s24, 0
      %p213 = por %p211, %p212
      %p214 = scmp.ne.s32.totalorder %s202, %s203
      %p215 = scmp.eq.s32.totalorder %s25, 1
      %p216 = por %p214, %p215
      %p218 = scmp.ne.s32.totalorder %s203, %s217
      %p219 = scmp.eq.s32.totalorder %s25, 0
      %p220 = por %p218, %p219
      %s222 = sadd.s32 %s221, 1
      %p225 = scmp.eq.s32.totalorder %s19, 1
      %p226 = scmp.ne.s32.totalorder %s221, %s223
      %p227 = scmp.eq.s32.totalorder %s19, 0
      %p228 = por %p226, %p227
      %p229 = scmp.ne.s32.totalorder %s221, %s223
      %p230 = scmp.eq.s32.totalorder %s24, 1
      %p231 = por %p229, %p230
      %p232 = scmp.ne.s32.totalorder %s223, %s224
      %p233 = scmp.eq.s32.totalorder %s24, 0
      %p234 = por %p232, %p233
      %p235 = scmp.ne.s32.totalorder %s223, %s224
      %p236 = scmp.eq.s32.totalorder %s25, 1
      %p237 = por %p235, %p236
      %p239 = scmp.ne.s32.totalorder %s224, %s238
      %p240 = scmp.eq.s32.totalorder %s25, 0
      %p241 = por %p239, %p240
      %s242 = ssub.s32 %s19, %s26
      %p243 = scmp.eq.s32.totalorder %s242, 0
      %s245 = sadd.s32 %s244, 1
      %s246 = scalar_select %p243, %s244, %s245
      %p249 = pneg %p243
      %p250 = scmp.eq.s32.totalorder %s19, 1
      %p251 = por %p249, %p250
      %p252 = scmp.ne.s32.totalorder %s244, %s247
      %p253 = scmp.eq.s32.totalorder %s19, 0
      %p254 = por %p252, %p253
      %p255 = scmp.ne.s32.totalorder %s244, %s247
      %p256 = scmp.eq.s32.totalorder %s24, 1
      %p257 = por %p255, %p256
      %p258 = scmp.ne.s32.totalorder %s247, %s248
      %p259 = scmp.eq.s32.totalorder %s24, 0
      %p260 = por %p258, %p259
      %p261 = scmp.ne.s32.totalorder %s247, %s248
      %p262 = scmp.eq.s32.totalorder %s25, 1
      %p263 = por %p261, %p262
      %p265 = scmp.ne.s32.totalorder %s248, %s264
      %p266 = scmp.eq.s32.totalorder %s25, 0
      %p267 = por %p265, %p266
      %p268 = scmp.le.s32.totalorder 1, %s19
      %p269 = scmp.lt.s32.totalorder %s19, 3
      %p270 = pnand %p268, %p269
      %p271 = pneg %p270
      // Predicated region
      $region9: #{tpu_custom_call.1} parent=5 // pred_check
        _
      $region10: #{tpu_custom_call.1} parent=5 // pred_check_branch
        %273 = sbr.rel (%p270) target = $region12
      $region11: #{tpu_custom_call.1} parent=5 // pred_region
        %s274 = ssub.s32 %s19, 1
        // Predicated region
        $region13: #{tpu_custom_call.1} parent=11 // pred_check
          %p275 = pneg %p66
        $region14: #{tpu_custom_call.1} parent=11 // pred_check_branch
          %277 = sbr.rel (%p275) target = $region16
        $region15: #{tpu_custom_call.1} parent=11 // pred_region
          _
        $region16: #{tpu_custom_call.1} parent=11 // pred_fallthru
          _
        // Predicated region
        $region17: #{tpu_custom_call.1} parent=11 // pred_check
          %p278 = pneg %p87
        $region18: #{tpu_custom_call.1} parent=11 // pred_check_branch
          %280 = sbr.rel (%p278) target = $region20
        $region19: #{tpu_custom_call.1} parent=11 // pred_region
          _
        $region20: #{tpu_custom_call.1} parent=11 // pred_fallthru
          _
        // Predicated region
        $region21: #{tpu_custom_call.1} parent=11 // pred_check
          %p281 = pneg %p108
        $region22: #{tpu_custom_call.1} parent=11 // pred_check_branch
          %283 = sbr.rel (%p281) target = $region24
        $region23: #{tpu_custom_call.1} parent=11 // pred_region
          _
        $region24: #{tpu_custom_call.1} parent=11 // pred_fallthru
          _
        // Predicated region
        $region25: #{tpu_custom_call.1} parent=11 // pred_check
          %p284 = pneg %p129
        $region26: #{tpu_custom_call.1} parent=11 // pred_check_branch
          %286 = sbr.rel (%p284) target = $region28
        $region27: #{tpu_custom_call.1} parent=11 // pred_region
          _
        $region28: #{tpu_custom_call.1} parent=11 // pred_fallthru
          _
        // Predicated region
        $region29: #{tpu_custom_call.1} parent=11 // pred_check
          %p287 = pneg %p150
        $region30: #{tpu_custom_call.1} parent=11 // pred_check_branch
          %289 = sbr.rel (%p287) target = $region32
        $region31: #{tpu_custom_call.1} parent=11 // pred_region
          _
        $region32: #{tpu_custom_call.1} parent=11 // pred_fallthru
          _
        // Predicated region
        $region33: #{tpu_custom_call.1} parent=11 // pred_check
          %p290 = pneg %p171
        $region34: #{tpu_custom_call.1} parent=11 // pred_check_branch
          %292 = sbr.rel (%p290) target = $region36
        $region35: #{tpu_custom_call.1} parent=11 // pred_region
          _
        $region36: #{tpu_custom_call.1} parent=11 // pred_fallthru
          _
        // Predicated region
        $region37: #{tpu_custom_call.1} parent=11 // pred_check
          %p293 = pneg %p192
        $region38: #{tpu_custom_call.1} parent=11 // pred_check_branch
          %295 = sbr.rel (%p293) target = $region40
        $region39: #{tpu_custom_call.1} parent=11 // pred_region
          _
        $region40: #{tpu_custom_call.1} parent=11 // pred_fallthru
          _
        // Predicated region
        $region41: #{tpu_custom_call.1} parent=11 // pred_check
          %p296 = pneg %p213
        $region42: #{tpu_custom_call.1} parent=11 // pred_check_branch
          %298 = sbr.rel (%p296) target = $region44
        $region43: #{tpu_custom_call.1} parent=11 // pred_region
          _
        $region44: #{tpu_custom_call.1} parent=11 // pred_fallthru
          _
        // Predicated region
        $region45: #{tpu_custom_call.1} parent=11 // pred_check
          %p299 = pneg %p234
        $region46: #{tpu_custom_call.1} parent=11 // pred_check_branch
          %301 = sbr.rel (%p299) target = $region48
        $region47: #{tpu_custom_call.1} parent=11 // pred_region
          _
        $region48: #{tpu_custom_call.1} parent=11 // pred_fallthru
          _
      $region12: #{tpu_custom_call.1} parent=5 // pred_fallthru
        _
      %p302 = scmp.lt.s32.totalorder %s19, 2
      // Predicated region
      $region49: #{tpu_custom_call.1} parent=5 // pred_check
        %p303 = pneg %p302
      $region50: #{tpu_custom_call.1} parent=5 // pred_check_branch
        %305 = sbr.rel (%p303) target = $region52
      $region51: #{tpu_custom_call.1} parent=5 // pred_region
        // Predicated region
        $region53: #{tpu_custom_call.1} parent=51 // pred_check
          %p306 = pneg %p39
        $region54: #{tpu_custom_call.1} parent=51 // pred_check_branch
          %308 = sbr.rel (%p306) target = $region56
        $region55: #{tpu_custom_call.1} parent=51 // pred_region
          %p309 = scmp.lt.s32.totalorder %s19, 1
          %s310 = scalar_select %p309, %s19, 1
          %s311 = smul.addr %s310, 8
          %s312 = scalar_lea.vmem %s0, %s311
        $region56: #{tpu_custom_call.1} parent=51 // pred_fallthru
          _
      $region52: #{tpu_custom_call.1} parent=5 // pred_fallthru
        _
      %p313 = scmp.le.s32.totalorder 1, %s19
      %p314 = scmp.lt.s32.totalorder %s19, 3
      %p315 = pnand %p313, %p314
      %p316 = pneg %p315
      // Predicated region
      $region57: #{tpu_custom_call.1} parent=5 // pred_check
        _
      $region58: #{tpu_custom_call.1} parent=5 // pred_check_branch
        %318 = sbr.rel (%p315) target = $region60
      $region59: #{tpu_custom_call.1} parent=5 // pred_region
        %s319 = ssub.s32 %s19, 1
        %p320 = scmp.lt.s32.totalorder %s24, 1
        %s321 = scalar_select %p320, %s24, 1
        %s322 = smul.addr %s321, 8
        %s323 = scalar_lea.vmem %s0, %s322
        %p324 = pneg %p45
        %p325 = pneg %p42
        %p326 = pneg %p66
        %p327 = pneg %p63
        %p328 = pneg %p87
        %p329 = pneg %p84
        %p330 = pneg %p108
        %p331 = pneg %p105
        %p332 = pneg %p129
        %p333 = pneg %p126
        %p334 = pneg %p150
        %p335 = pneg %p147
        %p336 = pneg %p171
        %p337 = pneg %p168
        %p338 = pneg %p192
        %p339 = pneg %p189
        %p340 = pneg %p213
        %p341 = pneg %p210
        %p342 = pneg %p234
        %p343 = pneg %p231
        %p344 = pneg %p260
        %p345 = pneg %p257
        %s346 = sand.u32 %s247, 1
        %s347 = scalar_lea.sflag [#allocation4], %s346
        %s348 = sand.u32 %s247, 1
        %s349 = scalar_lea.vmem [#allocation3], %s348
        %p350 = scmp.lt.s32.totalorder %s24, 1
        %s351 = scalar_select %p350, %s24, 1
        %s352 = smul.addr %s351, 8
        %s353 = scalar_lea.vmem %s0, %s352
        %v355 = vld [vmem:[%s353] sm:$0xff]
        %v356 = vlaneseq
        %v357 = vand.u32 %v356, 127
        %358 = vset.pattern.permute.xlu0 0
        %359 = vperm.xlu0 %358, %v355
        %v360 = vpop.permute.xlu0 %359
        %vm361 = vcmp.eq.s32.totalorder %v360, %v357
        %v362 = vsel %vm361, 1, 0
        %v363 = vcvt.s32.f32 %v362
        %v364 = vpack.c.bf16 %v363, %v363
        %v365 = vld [vmem:[%s1] sm:$0xf]
        %v366 = vld [vmem:[%s1 + $0x4] sm:$0xf]
        %v367 = vld [vmem:[%s1 + $0x8] sm:$0x3]
        %v371 = vunpack.c.l.b16 %v365
        %v372 = vunpack.c.l.b16 %v366
        %v373 = vunpack.c.l.b16 %v367
        %v374 = vpack.c.b16 %v372, %v371
        %v375 = vpack.c.b16 %v373, %v373
        %vm377 = vcmask 162816
        %v379 = vsel %vm377, %v364, 0
        %vm381 = vcmask 1041408
        %v383 = vsel %vm381, %v375, 0
        %385 = vmatpush.bf16.msra.mxu0 0
        %386 = vmatpush.bf16.msra.mxu0 0
        %387 = vmatpush.bf16.msra.mxu0 0
        %388 = vmatpush.bf16.msra.mxu0 0
        %389 = vmatpush.bf16.msra.mxu0 0
        %390 = vmatpush.bf16.msra.mxu0 0
        %391 = vmatpush.bf16.msra.mxu0 %v383
        %392 = vmatpush.bf16.msra.mxu0 %v374
        %393 = vmatmul.bf16.gmra.mxu0 %v379
        %v394 = vpop.f32.mrf.mxu0
        %v395 = vadd.f32 0.0, %v394
        %v396 = vpop.f32.mrf.mxu0
        %397 = vdwg.mxu0
        %v398 = vld [vmem:[%s2] sm:$0xf]
        %v399 = vld [vmem:[%s2 + $0x4] sm:$0xf]
        %v400 = vld [vmem:[%s2 + $0x8] sm:$0xf]
        %v401 = vld [vmem:[%s2 + $0xc] sm:$0xf]
        %v402 = vld [vmem:[%s2 + $0x10] sm:$0xf]
        %v403 = vld [vmem:[%s2 + $0x14] sm:$0xf]
        %v404 = vld [vmem:[%s7] sm:$0xff]
        %v405 = vld [vmem:[%s7 + $0x8] sm:$0x1]
        %v406 = vpack.c.bf16 %v395, %v395
        %v407 = vperm.slane %v404, 0
        %v410 = vunpack.c.l.b16 %v398
        %v411 = vunpack.c.l.b16 %v399
        %v412 = vpack.c.b16 %v411, %v410
        %vm414 = vcmask 130048
        %v416 = vsel %vm414, %v406, 0
        %418 = vmatpush.bf16.msra.mxu0 0
        %419 = vmatpush.bf16.msra.mxu0 0
        %420 = vmatpush.bf16.msra.mxu0 0
        %421 = vmatpush.bf16.msra.mxu0 0
        %422 = vmatpush.bf16.msra.mxu0 0
        %423 = vmatpush.bf16.msra.mxu0 0
        %424 = vmatpush.bf16.msra.mxu0 0
        %425 = vmatpush.bf16.msra.mxu0 %v412
        %426 = vmatmul.bf16.gmra.mxu0 %v416
        %v427 = vpop.f32.mrf.mxu0
        %v428 = vadd.f32 %v407, %v427
        %v429 = vpop.f32.mrf.mxu0
        %430 = vdwg.mxu0
        %v431 = vmul.f32 %v428, 0.35355338
        %v432 = vperm.slane %v404, 1
        %v435 = vunpack.c.l.b16 %v400
        %v436 = vunpack.c.l.b16 %v401
        %v437 = vpack.c.b16 %v436, %v435
        %439 = vmatpush.bf16.msra.mxu0 0
        %440 = vmatpush.bf16.msra.mxu0 0
        %441 = vmatpush.bf16.msra.mxu0 0
        %442 = vmatpush.bf16.msra.mxu0 0
        %443 = vmatpush.bf16.msra.mxu0 0
        %444 = vmatpush.bf16.msra.mxu0 0
        %445 = vmatpush.bf16.msra.mxu0 0
        %446 = vmatpush.bf16.msra.mxu0 %v437
        %447 = vmatmul.bf16.gmra.mxu0 %v416
        %v448 = vpop.f32.mrf.mxu0
        %v449 = vadd.f32 %v432, %v448
        %v450 = vpop.f32.mrf.mxu0
        %451 = vdwg.mxu0
        %v452 = vperm.slane %v404, 2
        %v455 = vunpack.c.l.b16 %v402
        %v456 = vunpack.c.l.b16 %v403
        %v457 = vpack.c.b16 %v456, %v455
        %459 = vmatpush.bf16.msra.mxu0 0
        %460 = vmatpush.bf16.msra.mxu0 0
        %461 = vmatpush.bf16.msra.mxu0 0
        %462 = vmatpush.bf16.msra.mxu0 0
        %463 = vmatpush.bf16.msra.mxu0 0
        %464 = vmatpush.bf16.msra.mxu0 0
        %465 = vmatpush.bf16.msra.mxu0 0
        %466 = vmatpush.bf16.msra.mxu0 %v457
        %467 = vmatmul.bf16.gmra.mxu0 %v416
        %v468 = vpop.f32.mrf.mxu0
        %v469 = vadd.f32 %v452, %v468
        %v470 = vpop.f32.mrf.mxu0
        %471 = vdwg.mxu0
        %v472 = vpack.c.bf16 %v431, %v431
        %v473 = vpack.c.bf16 %v449, %v449
        %v474 = vpack.c.bf16 %v469, %v469
        %vm475 = vcmask 64512
        %v477 = vsel %vm475, %v472, 0
        %v480 = vsel %vm475, %v473, 0
        %482 = vmatpush.bf16.xpose.msra.mxu0 0
        %483 = vmatpush.bf16.xpose.msra.mxu0 0
        %484 = vmatpush.bf16.xpose.msra.mxu0 0
        %485 = vmatpush.bf16.xpose.msra.mxu0 0
        %486 = vmatpush.bf16.xpose.msra.mxu0 0
        %487 = vmatpush.bf16.xpose.msra.mxu0 0
        %488 = vmatpush.bf16.xpose.msra.mxu0 0
        %489 = vmatpush.bf16.xpose.msra.mxu0 %v480
        %490 = vmatmul.bf16.gmra.mxu0 %v477
        %v491 = vpop.f32.mrf.mxu0
        %v492 = vadd.f32 0.0, %v491
        %v493 = vpop.f32.mrf.mxu0
        %494 = vdwg.mxu0
        %v495 = vsel %vm475, %v492, -inf
        %496 = vmax.xlane.f32.xlu0 %v495
        %v497 = vpop.xlane.xlu0 %496
        %v498 = vsub.f32 %v492, %v497
        %v499 = vmul.f32 %v498, 1.442695
        %v500 = vpow.pop %v499
        %v501 = vsel %vm475, %v500, 0.0
        %502 = vadd.xlane.f32.xlu0 %v501
        %v503 = vpop.xlane.xlu0 %502
        %v504 = vrcp.pop %v503
        %v505 = vmul.f32 %v500, %v504
        %v506 = vpack.c.bf16 %v505, %v505
        %v508 = vsel %vm475, %v506, 0
        %vm510 = vcmask 1043456
        %v512 = vsel %vm510, %v474, 0
        %514 = vmatpush.bf16.msra.mxu0 0
        %515 = vmatpush.bf16.msra.mxu0 0
        %516 = vmatpush.bf16.msra.mxu0 0
        %517 = vmatpush.bf16.msra.mxu0 0
        %518 = vmatpush.bf16.msra.mxu0 0
        %519 = vmatpush.bf16.msra.mxu0 0
        %520 = vmatpush.bf16.msra.mxu0 0
        %521 = vmatpush.bf16.msra.mxu0 %v512
        %522 = vmatmul.bf16.gmra.mxu0 %v508
        %v523 = vpop.f32.mrf.mxu0
        %v524 = vadd.f32 0.0, %v523
        %v525 = vpop.f32.mrf.mxu0
        %526 = vdwg.mxu0
        %527 = vst.msk [vmem:[#allocation2] sm:$0xff] %vm475, %v524
        %529 = vrot.lane.b32.xlu0 %v472, 120
        %v530 = vpop.permute.xlu0 %529
        %532 = vrot.lane.b32.xlu0 %v473, 120
        %v533 = vpop.permute.xlu0 %532
        %v535 = vsel %vm475, %v530, 0
        %v538 = vsel %vm475, %v533, 0
        %540 = vmatpush.bf16.xpose.msra.mxu0 0
        %541 = vmatpush.bf16.xpose.msra.mxu0 0
        %542 = vmatpush.bf16.xpose.msra.mxu0 0
        %543 = vmatpush.bf16.xpose.msra.mxu0 0
        %544 = vmatpush.bf16.xpose.msra.mxu0 0
        %545 = vmatpush.bf16.xpose.msra.mxu0 0
        %546 = vmatpush.bf16.xpose.msra.mxu0 0
        %547 = vmatpush.bf16.xpose.msra.mxu0 %v538
        %548 = vmatmul.bf16.gmra.mxu0 %v535
        %v549 = vpop.f32.mrf.mxu0
        %v550 = vadd.f32 0.0, %v549
        %v551 = vpop.f32.mrf.mxu0
        %552 = vdwg.mxu0
        %v553 = vsel %vm475, %v550, -inf
        %554 = vmax.xlane.f32.xlu0 %v553
        %v555 = vpop.xlane.xlu0 %554
        %v556 = vsub.f32 %v550, %v555
        %v557 = vmul.f32 %v556, 1.442695
        %v558 = vpow.pop %v557
        %v559 = vsel %vm475, %v558, 0.0
        %560 = vadd.xlane.f32.xlu0 %v559
        %v561 = vpop.xlane.xlu0 %560
        %v562 = vrcp.pop %v561
        %v563 = vmul.f32 %v558, %v562
        %v564 = vpack.c.bf16 %v563, %v563
        %566 = vrot.lane.b32.xlu0 %v474, 120
        %v567 = vpop.permute.xlu0 %566
        %v569 = vsel %vm475, %v564, 0
        %v572 = vsel %vm510, %v567, 0
        %574 = vmatpush.bf16.msra.mxu0 0
        %575 = vmatpush.bf16.msra.mxu0 0
        %576 = vmatpush.bf16.msra.mxu0 0
        %577 = vmatpush.bf16.msra.mxu0 0
        %578 = vmatpush.bf16.msra.mxu0 0
        %579 = vmatpush.bf16.msra.mxu0 0
        %580 = vmatpush.bf16.msra.mxu0 0
        %581 = vmatpush.bf16.msra.mxu0 %v572
        %582 = vmatmul.bf16.gmra.mxu0 %v569
        %v583 = vpop.f32.mrf.mxu0
        %v584 = vadd.f32 0.0, %v583
        %v585 = vpop.f32.mrf.mxu0
        %586 = vdwg.mxu0
        %588 = vrot.lane.b32.xlu0 %v584, 8
        %v589 = vpop.permute.xlu0 %588
        %vm591 = vcmask 130112
        %592 = vst.msk [vmem:[#allocation2] sm:$0xff] %vm591, %v589
        %v593 = vld [vmem:[#allocation2] sm:$0xff]
        %v594 = vpack.c.bf16 %v593, %v593
        %v595 = vld [vmem:[%s3] sm:$0xf]
        %v596 = vld [vmem:[%s3 + $0x4] sm:$0xf]
        %v597 = vperm.slane %v404, 3
        %v600 = vunpack.c.l.b16 %v595
        %v601 = vunpack.c.l.b16 %v596
        %v602 = vpack.c.b16 %v601, %v600
        %v605 = vsel %vm414, %v594, 0
        %607 = vmatpush.bf16.msra.mxu0 0
        %608 = vmatpush.bf16.msra.mxu0 0
        %609 = vmatpush.bf16.msra.mxu0 0
        %610 = vmatpush.bf16.msra.mxu0 0
        %611 = vmatpush.bf16.msra.mxu0 0
        %612 = vmatpush.bf16.msra.mxu0 0
        %613 = vmatpush.bf16.msra.mxu0 0
        %614 = vmatpush.bf16.msra.mxu0 %v602
        %615 = vmatmul.bf16.gmra.mxu0 %v605
        %v616 = vpop.f32.mrf.mxu0
        %v617 = vadd.f32 %v597, %v616
        %v618 = vpop.f32.mrf.mxu0
        %619 = vdwg.mxu0
        %v620 = vadd.f32 %v395, %v617
        %v621 = vsel %vm414, %v620, 0.0
        %622 = vadd.xlane.f32.xlu0 %v621
        %v623 = vpop.xlane.xlu0 %622
        %v624 = vrcp.pop 16.0
        %v625 = vmul.f32 16.0, %v624
        %v626 = vsub.f32 1.0, %v625
        %v627 = vmul.f32 %v624, %v626
        %v628 = vadd.f32 %v624, %v627
        %vm629 = vweird.f32 %v624
        %v630 = vsel %vm629, %v624, %v628
        %v631 = vmul.f32 %v623, %v630
        %v632 = vsub.f32 %v620, %v631
        %v633 = vmul.f32 %v632, %v632
        %v634 = vsel %vm414, %v633, 0.0
        %635 = vadd.xlane.f32.xlu0 %v634
        %v636 = vpop.xlane.xlu0 %635
        %v637 = vmul.f32 %v636, %v630
        %v638 = vadd.f32 %v637, 1e-05
        %v639 = vrsqrt.pop %v638
        %v640 = vmul.f32 %v639, %v638
        %v641 = vmul.f32 %v640, %v639
        %v642 = vmul.f32 0.5, %v641
        %v643 = vsub.f32 1.5, %v642
        %v644 = vmul.f32 %v639, %v643
        %vm645 = vweird.f32 %v638
        %vm646 = vweird.f32 %v639
        %vm647 = vmor %vm645, %vm646
        %v648 = vsel %vm647, %v639, %v644
        %v649 = vmul.f32 %v632, %v648
        %v650 = vperm.slane %v404, 4
        %v651 = vmul.f32 %v649, %v650
        %v652 = vperm.slane %v404, 5
        %v653 = vadd.f32 %v651, %v652
        %v654 = vpack.c.bf16 %v653, %v653
        %v655 = vld [vmem:[%s4] sm:$0xf]
        %v656 = vld [vmem:[%s4 + $0x4] sm:$0xf]
        %v657 = vld [vmem:[%s5] sm:$0x1]
        %v658 = vperm.slane %v657, 0
        %v661 = vunpack.c.l.b16 %v655
        %v662 = vunpack.c.l.b16 %v656
        %v663 = vpack.c.b16 %v662, %v661
        %v666 = vsel %vm414, %v654, 0
        %668 = vmatpush.bf16.msra.mxu0 0
        %669 = vmatpush.bf16.msra.mxu0 0
        %670 = vmatpush.bf16.msra.mxu0 0
        %671 = vmatpush.bf16.msra.mxu0 0
        %672 = vmatpush.bf16.msra.mxu0 0
        %673 = vmatpush.bf16.msra.mxu0 0
        %674 = vmatpush.bf16.msra.mxu0 0
        %675 = vmatpush.bf16.msra.mxu0 %v663
        %676 = vmatmul.bf16.gmra.mxu0 %v666
        %v677 = vpop.f32.mrf.mxu0
        %v678 = vadd.f32 %v658, %v677
        %v679 = vpop.f32.mrf.mxu0
        %680 = vdwg.mxu0
        %v681 = vmax.f32 %v678, 0.0
        %v682 = vpack.c.bf16 %v681, %v681
        %v683 = vld [vmem:[%s6] sm:$0xf]
        %v684 = vld [vmem:[%s6 + $0x4] sm:$0xf]
        %v685 = vld [vmem:[%s6 + $0x8] sm:$0xf]
        %v686 = vld [vmem:[%s6 + $0xc] sm:$0xf]
        %v687 = vperm.slane %v404, 6
        %v692 = vunpack.c.l.b16 %v683
        %v693 = vunpack.c.l.b16 %v684
        %v694 = vunpack.c.l.b16 %v685
        %v695 = vunpack.c.l.b16 %v686
        %v696 = vpack.c.b16 %v693, %v692
        %v697 = vpack.c.b16 %v695, %v694
        %vm700 = vcmask 261120
        %v702 = vsel %vm700, %v682, 0
        %704 = vmatpush.bf16.msra.mxu0 0
        %705 = vmatpush.bf16.msra.mxu0 0
        %706 = vmatpush.bf16.msra.mxu0 0
        %707 = vmatpush.bf16.msra.mxu0 0
        %708 = vmatpush.bf16.msra.mxu0 0
        %709 = vmatpush.bf16.msra.mxu0 0
        %710 = vmatpush.bf16.msra.mxu0 %v697
        %711 = vmatpush.bf16.msra.mxu0 %v696
        %712 = vmatmul.bf16.gmra.mxu0 %v702
        %v713 = vpop.f32.mrf.mxu0
        %v714 = vadd.f32 %v687, %v713
        %v715 = vpop.f32.mrf.mxu0
        %716 = vdwg.mxu0
        %v717 = vadd.f32 %v653, %v714
        %v718 = vsel %vm414, %v717, 0.0
        %719 = vadd.xlane.f32.xlu0 %v718
        %v720 = vpop.xlane.xlu0 %719
        %v721 = vmul.f32 %v720, %v630
        %v722 = vsub.f32 %v717, %v721
        %v723 = vmul.f32 %v722, %v722
        %v724 = vsel %vm414, %v723, 0.0
        %725 = vadd.xlane.f32.xlu0 %v724
        %v726 = vpop.xlane.xlu0 %725
        %v727 = vmul.f32 %v726, %v630
        %v728 = vadd.f32 %v727, 1e-05
        %v729 = vrsqrt.pop %v728
        %v730 = vmul.f32 %v729, %v728
        %v731 = vmul.f32 %v730, %v729
        %v732 = vmul.f32 0.5, %v731
        %v733 = vsub.f32 1.5, %v732
        %v734 = vmul.f32 %v729, %v733
        %vm735 = vweird.f32 %v728
        %vm736 = vweird.f32 %v729
        %vm737 = vmor %vm735, %vm736
        %v738 = vsel %vm737, %v729, %v734
        %v739 = vmul.f32 %v722, %v738
        %v740 = vperm.slane %v404, 7
        %v741 = vmul.f32 %v739, %v740
        %v742 = vperm.slane %v405, 0
        %v743 = vadd.f32 %v741, %v742
        %s744 = scalar_lea.vmem %s2, 24
        %v745 = vld [vmem:[%s744] sm:$0xf]
        %v746 = vld [vmem:[%s744 + $0x4] sm:$0xf]
        %v747 = vld [vmem:[%s744 + $0x8] sm:$0xf]
        %v748 = vld [vmem:[%s744 + $0xc] sm:$0xf]
        %v749 = vld [vmem:[%s744 + $0x10] sm:$0xf]
        %v750 = vld [vmem:[%s744 + $0x14] sm:$0xf]
        %s751 = scalar_lea.vmem %s7, 16
        %v752 = vld [vmem:[%s751] sm:$0xff]
        %v753 = vld [vmem:[%s751 + $0x8] sm:$0x1]
        %v754 = vpack.c.bf16 %v743, %v743
        %v755 = vperm.slane %v752, 0
        %v758 = vunpack.c.l.b16 %v745
        %v759 = vunpack.c.l.b16 %v746
        %v760 = vpack.c.b16 %v759, %v758
        %v763 = vsel %vm414, %v754, 0
        %765 = vmatpush.bf16.msra.mxu0 0
        %766 = vmatpush.bf16.msra.mxu0 0
        %767 = vmatpush.bf16.msra.mxu0 0
        %768 = vmatpush.bf16.msra.mxu0 0
        %769 = vmatpush.bf16.msra.mxu0 0
        %770 = vmatpush.bf16.msra.mxu0 0
        %771 = vmatpush.bf16.msra.mxu0 0
        %772 = vmatpush.bf16.msra.mxu0 %v760
        %773 = vmatmul.bf16.gmra.mxu0 %v763
        %v774 = vpop.f32.mrf.mxu0
        %v775 = vadd.f32 %v755, %v774
        %v776 = vpop.f32.mrf.mxu0
        %777 = vdwg.mxu0
        %v778 = vmul.f32 %v775, 0.35355338
        %v779 = vperm.slane %v752, 1
        %v782 = vunpack.c.l.b16 %v747
        %v783 = vunpack.c.l.b16 %v748
        %v784 = vpack.c.b16 %v783, %v782
        %786 = vmatpush.bf16.msra.mxu0 0
        %787 = vmatpush.bf16.msra.mxu0 0
        %788 = vmatpush.bf16.msra.mxu0 0
        %789 = vmatpush.bf16.msra.mxu0 0
        %790 = vmatpush.bf16.msra.mxu0 0
        %791 = vmatpush.bf16.msra.mxu0 0
        %792 = vmatpush.bf16.msra.mxu0 0
        %793 = vmatpush.bf16.msra.mxu0 %v784
        %794 = vmatmul.bf16.gmra.mxu0 %v763
        %v795 = vpop.f32.mrf.mxu0
        %v796 = vadd.f32 %v779, %v795
        %v797 = vpop.f32.mrf.mxu0
        %798 = vdwg.mxu0
        %v799 = vperm.slane %v752, 2
        %v802 = vunpack.c.l.b16 %v749
        %v803 = vunpack.c.l.b16 %v750
        %v804 = vpack.c.b16 %v803, %v802
        %806 = vmatpush.bf16.msra.mxu0 0
        %807 = vmatpush.bf16.msra.mxu0 0
        %808 = vmatpush.bf16.msra.mxu0 0
        %809 = vmatpush.bf16.msra.mxu0 0
        %810 = vmatpush.bf16.msra.mxu0 0
        %811 = vmatpush.bf16.msra.mxu0 0
        %812 = vmatpush.bf16.msra.mxu0 0
        %813 = vmatpush.bf16.msra.mxu0 %v804
        %814 = vmatmul.bf16.gmra.mxu0 %v763
        %v815 = vpop.f32.mrf.mxu0
        %v816 = vadd.f32 %v799, %v815
        %v817 = vpop.f32.mrf.mxu0
        %818 = vdwg.mxu0
        %v819 = vpack.c.bf16 %v778, %v778
        %v820 = vpack.c.bf16 %v796, %v796
        %v821 = vpack.c.bf16 %v816, %v816
        %v823 = vsel %vm475, %v819, 0
        %v826 = vsel %vm475, %v820, 0
        %828 = vmatpush.bf16.xpose.msra.mxu0 0
        %829 = vmatpush.bf16.xpose.msra.mxu0 0
        %830 = vmatpush.bf16.xpose.msra.mxu0 0
        %831 = vmatpush.bf16.xpose.msra.mxu0 0
        %832 = vmatpush.bf16.xpose.msra.mxu0 0
        %833 = vmatpush.bf16.xpose.msra.mxu0 0
        %834 = vmatpush.bf16.xpose.msra.mxu0 0
        %835 = vmatpush.bf16.xpose.msra.mxu0 %v826
        %836 = vmatmul.bf16.gmra.mxu0 %v823
        %v837 = vpop.f32.mrf.mxu0
        %v838 = vadd.f32 0.0, %v837
        %v839 = vpop.f32.mrf.mxu0
        %840 = vdwg.mxu0
        %v841 = vsel %vm475, %v838, -inf
        %842 = vmax.xlane.f32.xlu0 %v841
        %v843 = vpop.xlane.xlu0 %842
        %v844 = vsub.f32 %v838, %v843
        %v845 = vmul.f32 %v844, 1.442695
        %v846 = vpow.pop %v845
        %v847 = vsel %vm475, %v846, 0.0
        %848 = vadd.xlane.f32.xlu0 %v847
        %v849 = vpop.xlane.xlu0 %848
        %v850 = vrcp.pop %v849
        %v851 = vmul.f32 %v846, %v850
        %v852 = vpack.c.bf16 %v851, %v851
        %v854 = vsel %vm475, %v852, 0
        %v857 = vsel %vm510, %v821, 0
        %859 = vmatpush.bf16.msra.mxu0 0
        %860 = vmatpush.bf16.msra.mxu0 0
        %861 = vmatpush.bf16.msra.mxu0 0
        %862 = vmatpush.bf16.msra.mxu0 0
        %863 = vmatpush.bf16.msra.mxu0 0
        %864 = vmatpush.bf16.msra.mxu0 0
        %865 = vmatpush.bf16.msra.mxu0 0
        %866 = vmatpush.bf16.msra.mxu0 %v857
        %867 = vmatmul.bf16.gmra.mxu0 %v854
        %v868 = vpop.f32.mrf.mxu0
        %v869 = vadd.f32 0.0, %v868
        %v870 = vpop.f32.mrf.mxu0
        %871 = vdwg.mxu0
        %872 = vst.msk [vmem:[#allocation2] sm:$0xff] %vm475, %v869
        %874 = vrot.lane.b32.xlu0 %v819, 120
        %v875 = vpop.permute.xlu0 %874
        %877 = vrot.lane.b32.xlu0 %v820, 120
        %v878 = vpop.permute.xlu0 %877
        %v880 = vsel %vm475, %v875, 0
        %v883 = vsel %vm475, %v878, 0
        %885 = vmatpush.bf16.xpose.msra.mxu0 0
        %886 = vmatpush.bf16.xpose.msra.mxu0 0
        %887 = vmatpush.bf16.xpose.msra.mxu0 0
        %888 = vmatpush.bf16.xpose.msra.mxu0 0
        %889 = vmatpush.bf16.xpose.msra.mxu0 0
        %890 = vmatpush.bf16.xpose.msra.mxu0 0
        %891 = vmatpush.bf16.xpose.msra.mxu0 0
        %892 = vmatpush.bf16.xpose.msra.mxu0 %v883
        %893 = vmatmul.bf16.gmra.mxu0 %v880
        %v894 = vpop.f32.mrf.mxu0
        %v895 = vadd.f32 0.0, %v894
        %v896 = vpop.f32.mrf.mxu0
        %897 = vdwg.mxu0
        %v898 = vsel %vm475, %v895, -inf
        %899 = vmax.xlane.f32.xlu0 %v898
        %v900 = vpop.xlane.xlu0 %899
        %v901 = vsub.f32 %v895, %v900
        %v902 = vmul.f32 %v901, 1.442695
        %v903 = vpow.pop %v902
        %v904 = vsel %vm475, %v903, 0.0
        %905 = vadd.xlane.f32.xlu0 %v904
        %v906 = vpop.xlane.xlu0 %905
        %v907 = vrcp.pop %v906
        %v908 = vmul.f32 %v903, %v907
        %v909 = vpack.c.bf16 %v908, %v908
        %911 = vrot.lane.b32.xlu0 %v821, 120
        %v912 = vpop.permute.xlu0 %911
        %v914 = vsel %vm475, %v909, 0
        %v917 = vsel %vm510, %v912, 0
        %919 = vmatpush.bf16.msra.mxu0 0
        %920 = vmatpush.bf16.msra.mxu0 0
        %921 = vmatpush.bf16.msra.mxu0 0
        %922 = vmatpush.bf16.msra.mxu0 0
        %923 = vmatpush.bf16.msra.mxu0 0
        %924 = vmatpush.bf16.msra.mxu0 0
        %925 = vmatpush.bf16.msra.mxu0 0
        %926 = vmatpush.bf16.msra.mxu0 %v917
        %927 = vmatmul.bf16.gmra.mxu0 %v914
        %v928 = vpop.f32.mrf.mxu0
        %v929 = vadd.f32 0.0, %v928
        %v930 = vpop.f32.mrf.mxu0
        %931 = vdwg.mxu0
        %933 = vrot.lane.b32.xlu0 %v929, 8
        %v934 = vpop.permute.xlu0 %933
        %936 = vst.msk [vmem:[#allocation2] sm:$0xff] %vm591, %v934
        %v937 = vld [vmem:[#allocation2] sm:$0xff]
        %v938 = vpack.c.bf16 %v937, %v937
        %s939 = scalar_lea.vmem %s3, 8
        %v940 = vld [vmem:[%s939] sm:$0xf]
        %v941 = vld [vmem:[%s939 + $0x4] sm:$0xf]
        %v942 = vperm.slane %v752, 3
        %v945 = vunpack.c.l.b16 %v940
        %v946 = vunpack.c.l.b16 %v941
        %v947 = vpack.c.b16 %v946, %v945
        %v950 = vsel %vm414, %v938, 0
        %952 = vmatpush.bf16.msra.mxu0 0
        %953 = vmatpush.bf16.msra.mxu0 0
        %954 = vmatpush.bf16.msra.mxu0 0
        %955 = vmatpush.bf16.msra.mxu0 0
        %956 = vmatpush.bf16.msra.mxu0 0
        %957 = vmatpush.bf16.msra.mxu0 0
        %958 = vmatpush.bf16.msra.mxu0 0
        %959 = vmatpush.bf16.msra.mxu0 %v947
        %960 = vmatmul.bf16.gmra.mxu0 %v950
        %v961 = vpop.f32.mrf.mxu0
        %v962 = vadd.f32 %v942, %v961
        %v963 = vpop.f32.mrf.mxu0
        %964 = vdwg.mxu0
        %v965 = vadd.f32 %v743, %v962
        %v966 = vsel %vm414, %v965, 0.0
        %967 = vadd.xlane.f32.xlu0 %v966
        %v968 = vpop.xlane.xlu0 %967
        %v969 = vmul.f32 %v968, %v630
        %v970 = vsub.f32 %v965, %v969
        %v971 = vmul.f32 %v970, %v970
        %v972 = vsel %vm414, %v971, 0.0
        %973 = vadd.xlane.f32.xlu0 %v972
        %v974 = vpop.xlane.xlu0 %973
        %v975 = vmul.f32 %v974, %v630
        %v976 = vadd.f32 %v975, 1e-05
        %v977 = vrsqrt.pop %v976
        %v978 = vmul.f32 %v977, %v976
        %v979 = vmul.f32 %v978, %v977
        %v980 = vmul.f32 0.5, %v979
        %v981 = vsub.f32 1.5, %v980
        %v982 = vmul.f32 %v977, %v981
        %vm983 = vweird.f32 %v976
        %vm984 = vweird.f32 %v977
        %vm985 = vmor %vm983, %vm984
        %v986 = vsel %vm985, %v977, %v982
        %v987 = vmul.f32 %v970, %v986
        %v988 = vperm.slane %v752, 4
        %v989 = vmul.f32 %v987, %v988
        %v990 = vperm.slane %v752, 5
        %v991 = vadd.f32 %v989, %v990
        %v992 = vpack.c.bf16 %v991, %v991
        %s993 = scalar_lea.vmem %s4, 8
        %v994 = vld [vmem:[%s993] sm:$0xf]
        %v995 = vld [vmem:[%s993 + $0x4] sm:$0xf]
        %v996 = vld [vmem:[%s5 + $0x1] sm:$0x1]
        %v997 = vperm.slane %v996, 0
        %v1000 = vunpack.c.l.b16 %v994
        %v1001 = vunpack.c.l.b16 %v995
        %v1002 = vpack.c.b16 %v1001, %v1000
        %v1005 = vsel %vm414, %v992, 0
        %1007 = vmatpush.bf16.msra.mxu0 0
        %1008 = vmatpush.bf16.msra.mxu0 0
        %1009 = vmatpush.bf16.msra.mxu0 0
        %1010 = vmatpush.bf16.msra.mxu0 0
        %1011 = vmatpush.bf16.msra.mxu0 0
        %1012 = vmatpush.bf16.msra.mxu0 0
        %1013 = vmatpush.bf16.msra.mxu0 0
        %1014 = vmatpush.bf16.msra.mxu0 %v1002
        %1015 = vmatmul.bf16.gmra.mxu0 %v1005
        %v1016 = vpop.f32.mrf.mxu0
        %v1017 = vadd.f32 %v997, %v1016
        %v1018 = vpop.f32.mrf.mxu0
        %1019 = vdwg.mxu0
        %v1020 = vmax.f32 %v1017, 0.0
        %v1021 = vpack.c.bf16 %v1020, %v1020
        %s1022 = scalar_lea.vmem %s6, 16
        %v1023 = vld [vmem:[%s1022] sm:$0xf]
        %v1024 = vld [vmem:[%s1022 + $0x4] sm:$0xf]
        %v1025 = vld [vmem:[%s1022 + $0x8] sm:$0xf]
        %v1026 = vld [vmem:[%s1022 + $0xc] sm:$0xf]
        %v1027 = vperm.slane %v752, 6
        %v1032 = vunpack.c.l.b16 %v1023
        %v1033 = vunpack.c.l.b16 %v1024
        %v1034 = vunpack.c.l.b16 %v1025
        %v1035 = vunpack.c.l.b16 %v1026
        %v1036 = vpack.c.b16 %v1033, %v1032
        %v1037 = vpack.c.b16 %v1035, %v1034
        %v1041 = vsel %vm700, %v1021, 0
        %1043 = vmatpush.bf16.msra.mxu0 0
        %1044 = vmatpush.bf16.msra.mxu0 0
        %1045 = vmatpush.bf16.msra.mxu0 0
        %1046 = vmatpush.bf16.msra.mxu0 0
        %1047 = vmatpush.bf16.msra.mxu0 0
        %1048 = vmatpush.bf16.msra.mxu0 0
        %1049 = vmatpush.bf16.msra.mxu0 %v1037
        %1050 = vmatpush.bf16.msra.mxu0 %v1036
        %1051 = vmatmul.bf16.gmra.mxu0 %v1041
        %v1052 = vpop.f32.mrf.mxu0
        %v1053 = vadd.f32 %v1027, %v1052
        %v1054 = vpop.f32.mrf.mxu0
        %1055 = vdwg.mxu0
        %v1056 = vadd.f32 %v991, %v1053
        %v1057 = vsel %vm414, %v1056, 0.0
        %1058 = vadd.xlane.f32.xlu0 %v1057
        %v1059 = vpop.xlane.xlu0 %1058
        %v1060 = vmul.f32 %v1059, %v630
        %v1061 = vsub.f32 %v1056, %v1060
        %v1062 = vmul.f32 %v1061, %v1061
        %v1063 = vsel %vm414, %v1062, 0.0
        %1064 = vadd.xlane.f32.xlu0 %v1063
        %v1065 = vpop.xlane.xlu0 %1064
        %v1066 = vmul.f32 %v1065, %v630
        %v1067 = vadd.f32 %v1066, 1e-05
        %v1068 = vrsqrt.pop %v1067
        %v1069 = vmul.f32 %v1068, %v1067
        %v1070 = vmul.f32 %v1069, %v1068
        %v1071 = vmul.f32 0.5, %v1070
        %v1072 = vsub.f32 1.5, %v1071
        %v1073 = vmul.f32 %v1068, %v1072
        %vm1074 = vweird.f32 %v1067
        %vm1075 = vweird.f32 %v1068
        %vm1076 = vmor %vm1074, %vm1075
        %v1077 = vsel %vm1076, %v1068, %v1073
        %v1078 = vmul.f32 %v1061, %v1077
        %v1079 = vperm.slane %v752, 7
        %v1080 = vmul.f32 %v1078, %v1079
        %v1081 = vperm.slane %v753, 0
        %v1082 = vadd.f32 %v1080, %v1081
        %v1083 = vpack.c.bf16 %v1082, %v1082
        %v1084 = vld [vmem:[%s8] sm:$0xf]
        %v1085 = vld [vmem:[%s8 + $0x4] sm:$0xf]
        %v1086 = vld [vmem:[%s9] sm:$0x1]
        %v1088 = vshrl.u32 %v1083, 16
        %v1090 = vrot.slane %v1088, 3
        %v1093 = vunpack.c.l.b16 %v1084
        %v1094 = vunpack.c.l.b16 %v1085
        %v1095 = vpack.c.b16 %v1094, %v1093
        %v1098 = vsel %vm414, %v1090, 0
        %1100 = vmatpush.bf16.msra.mxu0 0
        %1101 = vmatpush.bf16.msra.mxu0 0
        %1102 = vmatpush.bf16.msra.mxu0 0
        %1103 = vmatpush.bf16.msra.mxu0 0
        %1104 = vmatpush.bf16.msra.mxu0 0
        %1105 = vmatpush.bf16.msra.mxu0 0
        %1106 = vmatpush.bf16.msra.mxu0 0
        %1107 = vmatpush.bf16.msra.mxu0 %v1095
        %1108 = vmatmul.bf16.gmra.mxu0 %v1098
        %v1109 = vpop.f32.mrf.mxu0
        %v1110 = vadd.f32 %v1086, %v1109
        %v1111 = vpop.f32.mrf.mxu0
        %1112 = vdwg.mxu0
        %1113 = vst [vmem:[%s349] sm:$0x1] %v1110
        %s1114 = sand.u32 %s247, 1
        %s1115 = scalar_lea.sflag [#allocation4], %s1114
        %s1116 = sand.u32 %s247, 1
        %s1117 = scalar_lea.vmem [#allocation3], %s1116
        // Predicated region
        $region61: #{tpu_custom_call.1} parent=59 // pred_check
          %p1118 = pneg %p257
        $region62: #{tpu_custom_call.1} parent=59 // pred_check_branch
          %1120 = sbr.rel (%p1118) target = $region64
        $region63: #{tpu_custom_call.1} parent=59 // pred_region
          %1122 = vsyncadd %s1115, 0
          %s1123 = scalar_lea.hbm %s10, %s24
          %s1125 = sshll.u32 %s1117, 4
          %s1126 = int_to_ptr.vmem [resolvable:$true] %s1125
          %s1127 = sshll.u32 %s1123, 4
          %s1128 = int_to_ptr.hbm [resolvable:$true] %s1127
          %1130 = dma.vmem_to_hbm [thread:$0]  %s1126, 16, %s1128, %s1115
        $region64: #{tpu_custom_call.1} parent=59 // pred_fallthru
          _
      $region60: #{tpu_custom_call.1} parent=5 // pred_fallthru
        _
      %p1131 = scmp.le.s32.totalorder 2, %s19
      // Predicated region
      $region65: #{tpu_custom_call.1} parent=5 // pred_check
        %p1132 = pneg %p1131
      $region66: #{tpu_custom_call.1} parent=5 // pred_check_branch
        %1134 = sbr.rel (%p1132) target = $region68
      $region67: #{tpu_custom_call.1} parent=5 // pred_region
        %s1135 = ssub.s32 %s19, 2
        // Predicated region
        $region69: #{tpu_custom_call.1} parent=67 // pred_check
          %p1136 = pneg %p263
        $region70: #{tpu_custom_call.1} parent=67 // pred_check_branch
          %1138 = sbr.rel (%p1136) target = $region72
        $region71: #{tpu_custom_call.1} parent=67 // pred_region
          %s1139 = sand.u32 %s248, 1
          %s1140 = scalar_lea.sflag [#allocation4], %s1139
          %s1141 = sand.u32 %s248, 1
          %s1142 = scalar_lea.vmem [#allocation3], %s1141
          %1144 = dma.done %s1140, 16
        $region72: #{tpu_custom_call.1} parent=67 // pred_fallthru
          _
      $region68: #{tpu_custom_call.1} parent=5 // pred_fallthru
        _
    $region6: #{tpu_custom_call.1} parent=1 // loop_footer
      %s23 = sadd.s32 1, %s19
    $region7: #{tpu_custom_call.1} parent=1 // loop_footer_branch
      %18 = sbr.rel target = $region3
    $region8: #{tpu_custom_call.1} parent=1 // loop_exit
      _
    %1145 = vsyncpa [#allocation4], 1
    %s1146 = scalar_lea.sflag [#allocation4], 1
    %1147 = vsyncpa %s1146, 1

</llo_original>
